<compile_context>
chip_gen: v5e
topology: v5e:2x2
jax: 0.10.0
libtpu: 0.0.40
codegen_flags: <defaults>
</compile_context>

<pallas_src>
import jax
import jax.numpy as jnp
from jax.experimental import pallas as pl
from jax.experimental.pallas import tpu as pltpu

# ----- config consistent with the module's `opt` -----
VOCAB = 10          # opt.vocab_size   -> logit size VOCAB + 1
E_IN = 16           # opt.input_encoding_size
RNN = 32            # opt.rnn_size
SEQ_LEN = 8         # opt.seq_length
FC_FEAT = 24        # opt.fc_feat_size
ATT_FEAT = 20       # opt.att_feat_size
ATT_HID = 16        # opt.att_hid_size
NUM_ATTR = 12       # opt.num_attr
SG_EMB = 8          # opt.sg_label_embed_size
U = 3               # opt.use_num_attr
BATCH = 2
N_OBJ = 6           # number of attention regions

VPAD = ((VOCAB + 1 + 127) // 128) * 128   # lane-dense logit width (=128)
GATE = 4 * RNN                            # LSTM gate width (=128)


def _cspec(shape):
    """Full-array block with a constant index map (stays resident in VMEM)."""
    nd = len(shape)
    return pl.BlockSpec(shape, lambda *_, _n=nd: (0,) * _n)


# ---------------------------------------------------------------------------
# Kernel 1: fused _prepare_feature
# ---------------------------------------------------------------------------
def _prepare_kernel(fc_ref, att_ref, attrin_ref,
                    fc_w, fc_b, att_w, att_b,
                    proj_w, proj_b,
                    fusA_w, fusB_w, fus_b,
                    c2aa_w, c2aa_b,
                    att_w_fc, att_b_gate,
                    pfcg_o, attr_o, pattr_o):
    f32 = jnp.float32
    # fc_embed: Linear -> ReLU (dropout identity in eval)
    p_fc = jnp.maximum(
        jnp.dot(fc_ref[...], fc_w[...], preferred_element_type=f32) + fc_b[...], 0.0)
    # loop-invariant att-LSTM gate contribution: p_fc @ W_fc + (b_ih + b_hh)
    pfcg_o[...] = (jnp.dot(p_fc, att_w_fc[...], preferred_element_type=f32)
                   + att_b_gate[...])
    # att_embed: Linear -> ReLU
    att_emb = jnp.maximum(
        jnp.dot(att_ref[...], att_w[...], preferred_element_type=f32) + att_b[...], 0.0)
    # attr_proj: Linear -> ReLU
    attr_vecs = jnp.maximum(
        jnp.dot(attrin_ref[...], proj_w[...], preferred_element_type=f32)
        + proj_b[...], 0.0)
    # fusion_attr(cat([att_emb, attr_vecs])) + attr_vecs  (weight split in halves
    # to avoid materializing the concatenation)
    fused = jnp.maximum(
        jnp.dot(att_emb, fusA_w[...], preferred_element_type=f32)
        + jnp.dot(attr_vecs, fusB_w[...], preferred_element_type=f32)
        + fus_b[...], 0.0) + attr_vecs
    attr_o[...] = fused
    # ctx2att_attr
    pattr_o[...] = jnp.dot(fused, c2aa_w[...], preferred_element_type=f32) + c2aa_b[...]


def _prepare_features(p, fc_p, att2d, attr_in):
    BP = fc_p.shape[0]
    M = att2d.shape[0]
    return pl.pallas_call(
        _prepare_kernel,
        out_shape=(jax.ShapeDtypeStruct((BP, GATE), jnp.float32),
                   jax.ShapeDtypeStruct((M, RNN), jnp.float32),
                   jax.ShapeDtypeStruct((M, ATT_HID), jnp.float32)),
        grid=(1,),
        in_specs=[_cspec(fc_p.shape), _cspec(att2d.shape), _cspec(attr_in.shape),
                  _cspec(p["fc_w"].shape), _cspec(p["fc_b"].shape),
                  _cspec(p["att_w"].shape), _cspec(p["att_b"].shape),
                  _cspec(p["proj_w"].shape), _cspec(p["proj_b"].shape),
                  _cspec(p["fus_w_att"].shape), _cspec(p["fus_w_attr"].shape),
                  _cspec(p["fus_b"].shape),
                  _cspec(p["c2aa_w"].shape), _cspec(p["c2aa_b"].shape),
                  _cspec(p["att_w_fc"].shape), _cspec(p["att_b_gate"].shape)],
        out_specs=(_cspec((BP, GATE)), _cspec((M, RNN)), _cspec((M, ATT_HID))),
    )(fc_p, att2d, attr_in,
      p["fc_w"], p["fc_b"], p["att_w"], p["att_b"],
      p["proj_w"], p["proj_b"],
      p["fus_w_att"], p["fus_w_attr"], p["fus_b"],
      p["c2aa_w"], p["c2aa_b"],
      p["att_w_fc"], p["att_b_gate"])


# ---------------------------------------------------------------------------
# Kernel 2: fused per-timestep body, time loop folded into the grid
# ---------------------------------------------------------------------------
def _decode_kernel(act_ref,
                   xt_ref, pfcg_ref, attr_ref, pattr_ref,
                   w_att_h, w_att_x, whh_att,
                   w_lang_a, w_lang_h, whh_lang, b_lang,
                   h2att_w, h2att_b, alpha_w,
                   logit_w, logit_b,
                   out_ref,
                   h_att_sc, c_att_sc, h_lang_sc, c_lang_sc):
    f32 = jnp.float32
    H = RNN
    t = pl.program_id(0)

    @pl.when(t == 0)
    def _init():          # init_hidden
        h_att_sc[...] = jnp.zeros_like(h_att_sc)
        c_att_sc[...] = jnp.zeros_like(c_att_sc)
        h_lang_sc[...] = jnp.zeros_like(h_lang_sc)
        c_lang_sc[...] = jnp.zeros_like(c_lang_sc)

    active = act_ref[t]

    @pl.when(active == 0)
    def _skip():          # replicates the python-level early `break`
        out_ref[...] = jnp.zeros(out_ref.shape, out_ref.dtype)

    @pl.when(active == 1)
    def _step():
        xt = xt_ref[0]                         # (BP, E_IN)
        h_att_p = h_att_sc[...]
        c_att_p = c_att_sc[...]
        h_lang_p = h_lang_sc[...]
        c_lang_p = c_lang_sc[...]

        # ---- att_lstm: input [prev_h(=h_lang), p_fc, xt]; p_fc part hoisted ----
        g1 = (jnp.dot(h_lang_p, w_att_h[...], preferred_element_type=f32)
              + jnp.dot(xt, w_att_x[...], preferred_element_type=f32)
              + jnp.dot(h_att_p, whh_att[...], preferred_element_type=f32)
              + pfcg_ref[...])
        i1 = jax.nn.sigmoid(g1[:, 0 * H:1 * H])
        f1 = jax.nn.sigmoid(g1[:, 1 * H:2 * H])
        n1 = jnp.tanh(g1[:, 2 * H:3 * H])
        o1 = jax.nn.sigmoid(g1[:, 3 * H:4 * H])
        c_att = f1 * c_att_p + i1 * n1
        h_att = o1 * jnp.tanh(c_att)

        # ---- attention over attr_feats (att_masks=None) ----
        att_h = (jnp.dot(h_att, h2att_w[...], preferred_element_type=f32)
                 + h2att_b[...])                              # (BP, A)
        dot = jnp.tanh(pattr_ref[...] + att_h[:, None, :])    # (BP, No, A)
        # alpha_net bias omitted: a per-row constant shift is softmax-invariant.
        scores = jnp.sum(dot * alpha_w[...], axis=-1)         # (BP, No)
        m = jnp.max(scores, axis=1, keepdims=True)
        e = jnp.exp(scores - m)
        w = e / jnp.sum(e, axis=1, keepdims=True)
        att_res = jnp.sum(w[:, :, None] * attr_ref[...], axis=1)   # (BP, RNN)

        # ---- lang_lstm: input [att_res, h_att] ----
        g2 = (jnp.dot(att_res, w_lang_a[...], preferred_element_type=f32)
              + jnp.dot(h_att, w_lang_h[...], preferred_element_type=f32)
              + jnp.dot(h_lang_p, whh_lang[...], preferred_element_type=f32)
              + b_lang[...])
        i2 = jax.nn.sigmoid(g2[:, 0 * H:1 * H])
        f2 = jax.nn.sigmoid(g2[:, 1 * H:2 * H])
        n2 = jnp.tanh(g2[:, 2 * H:3 * H])
        o2 = jax.nn.sigmoid(g2[:, 3 * H:4 * H])
        c_lang = f2 * c_lang_p + i2 * n2
        h_lang = o2 * jnp.tanh(c_lang)

        # ---- logit + log_softmax (lane-padded; pad columns have bias -1e30) ----
        y = (jnp.dot(h_lang, logit_w[...], preferred_element_type=f32)
             + logit_b[...])                                  # (BP, VPAD)
        mm = jnp.max(y, axis=1, keepdims=True)
        z = y - mm
        lse = jnp.log(jnp.sum(jnp.exp(z), axis=1, keepdims=True))
        out_ref[0] = z - lse

        # carry the state to the next grid step (VMEM scratch persists)
        h_att_sc[...] = h_att
        c_att_sc[...] = c_att
        h_lang_sc[...] = h_lang
        c_lang_sc[...] = c_lang


def _decode(active, xt_all, pfc_gate, attr3, pattr3, p, logit_w_pad, logit_b_pad):
    T1, BP, _ = xt_all.shape
    No = attr3.shape[1]
    grid_spec = pltpu.PrefetchScalarGridSpec(
        num_scalar_prefetch=1,
        grid=(T1,),
        in_specs=[
            pl.BlockSpec((1, BP, E_IN), lambda t, *_: (t, 0, 0)),  # xt, time-tiled
            _cspec((BP, GATE)),            # hoisted p_fc gate contribution
            _cspec((BP, No, RNN)),         # attr_feats
            _cspec((BP, No, ATT_HID)),     # p_attr_feats
            _cspec((RNN, GATE)),           # att_lstm W_ih[prev_h block]
            _cspec((E_IN, GATE)),          # att_lstm W_ih[xt block]
            _cspec((RNN, GATE)),           # att_lstm W_hh
            _cspec((RNN, GATE)),           # lang_lstm W_ih[att_res block]
            _cspec((RNN, GATE)),           # lang_lstm W_ih[h_att block]
            _cspec((RNN, GATE)),           # lang_lstm W_hh
            _cspec((1, GATE)),             # lang_lstm bias
            _cspec((RNN, ATT_HID)),        # h2att W
            _cspec((1, ATT_HID)),          # h2att b
            _cspec((1, 1, ATT_HID)),       # alpha_net W
            _cspec((RNN, VPAD)),           # logit W (padded)
            _cspec((1, VPAD)),             # logit b (padded, -1e30 on pad cols)
        ],
        out_specs=pl.BlockSpec((1, BP, VPAD), lambda t, *_: (t, 0, 0)),
        scratch_shapes=[pltpu.VMEM((BP, RNN), jnp.float32) for _ in range(4)],
    )
    return pl.pallas_call(
        _decode_kernel,
        out_shape=jax.ShapeDtypeStruct((T1, BP, VPAD), jnp.float32),
        grid_spec=grid_spec,
        compiler_params=pltpu.CompilerParams(
            dimension_semantics=("arbitrary",)),  # sequential carry via scratch
    )(active, xt_all, pfc_gate, attr3, pattr3,
      p["att_w_prevh"], p["att_w_x"], p["att_whh"],
      p["lang_w_att"], p["lang_w_h"], p["lang_whh"], p["lang_b_gate"],
      p["h2att_w"], p["h2att_b"], p["alpha_w"],
      logit_w_pad, logit_b_pad)


# ---------------------------------------------------------------------------
# deterministic synthetic parameters (same math as the torch module)
# ---------------------------------------------------------------------------
def init_params(key):
    keys = iter(jax.random.split(key, 40))

    def w(shape, scale=0.1):
        return (scale * jax.random.normal(next(keys), shape)).astype(jnp.float32)

    return {
        "embed_table": w((VOCAB + 1, E_IN)),
        "fc_w": w((FC_FEAT, RNN)), "fc_b": w((1, RNN)),
        "att_w": w((ATT_FEAT, RNN)), "att_b": w((1, RNN)),
        "attr_table": w((NUM_ATTR, SG_EMB)),
        "proj_w": w((SG_EMB * U, RNN)), "proj_b": w((1, RNN)),
        # fusion_attr weight (2*RNN, RNN) split into the [att_emb | attr_vecs] halves
        "fus_w_att": w((RNN, RNN)), "fus_w_attr": w((RNN, RNN)), "fus_b": w((1, RNN)),
        "c2aa_w": w((RNN, ATT_HID)), "c2aa_b": w((1, ATT_HID)),
        "logit_w": w((RNN, VOCAB + 1)), "logit_b": w((1, VOCAB + 1)),
        "h2att_w": w((RNN, ATT_HID)), "h2att_b": w((1, ATT_HID)),
        # alpha_net weight; its bias is softmax-invariant and therefore omitted
        "alpha_w": w((1, 1, ATT_HID)),
        # att_lstm: W_ih split by input block [prev_h, p_fc, xt]; b = b_ih + b_hh
        "att_w_prevh": w((RNN, GATE)), "att_w_fc": w((RNN, GATE)),
        "att_w_x": w((E_IN, GATE)), "att_whh": w((RNN, GATE)),
        "att_b_gate": w((1, GATE)),
        # lang_lstm: W_ih split by input block [att_res, h_att]; b = b_ih + b_hh
        "lang_w_att": w((RNN, GATE)), "lang_w_h": w((RNN, GATE)),
        "lang_whh": w((RNN, GATE)), "lang_b_gate": w((1, GATE)),
    }


# ---------------------------------------------------------------------------
# LSFF forward (eval mode, att_masks=None) -- fully jitted, no host sync
# ---------------------------------------------------------------------------
def _lsff_forward_impl(p, fc_feats, att_feats, attr_labels, seq):
    B = fc_feats.shape[0]
    No = att_feats.shape[1]
    T = seq.shape[1]

    # pad the batch (row) dim to a multiple of 8 sublanes
    BP = ((B + 7) // 8) * 8
    pad = BP - B
    fc_p = jnp.pad(fc_feats, ((0, pad), (0, 0)))
    att_p = jnp.pad(att_feats, ((0, pad), (0, 0), (0, 0)))
    lbl_p = jnp.pad(attr_labels, ((0, pad), (0, 0), (0, 0)))
    seq_p = jnp.pad(seq, ((0, pad), (0, 0)))

    # attribute embedding: Embedding -> ReLU (one-time gather, glue)
    lbl = lbl_p[:, :, 1:1 + U]
    attr_emb = jnp.maximum(jnp.take(p["attr_table"], lbl, axis=0), 0.0)  # (BP,No,U,SG)
    attr_in = attr_emb.reshape(BP * No, U * SG_EMB)
    att2d = att_p.reshape(BP * No, ATT_FEAT)

    # fused _prepare_feature; pp_att_feats (ctx2att) is unused downstream -> not computed
    pfc_gate, attr2d, pattr2d = _prepare_features(p, fc_p, att2d, attr_in)
    attr3 = attr2d.reshape(BP, No, RNN)
    pattr3 = pattr2d.reshape(BP, No, ATT_HID)

    # token embeddings for every step, gathered once: (T-1, BP, E_IN)
    xt_all = jnp.maximum(jnp.take(p["embed_table"], seq_p[:, :T - 1].T, axis=0), 0.0)

    # device-side replica of `if i >= 1 and seq[:, i].sum() == 0: break`
    nz = (jnp.sum(seq[:, :T - 1], axis=0) != 0).astype(jnp.int32)
    nz = nz.at[0].set(1)
    active = jnp.cumprod(nz).astype(jnp.int32)                       # (T-1,)

    # lane-dense logit weights; pad columns get -1e30 bias so they vanish in softmax
    logit_w_pad = jnp.zeros((RNN, VPAD), jnp.float32).at[:, :VOCAB + 1].set(p["logit_w"])
    logit_b_pad = jnp.full((1, VPAD), -1e30, jnp.float32).at[:, :VOCAB + 1].set(p["logit_b"])

    out_pad = _decode(active, xt_all, pfc_gate, attr3, pattr3, p,
                      logit_w_pad, logit_b_pad)                      # (T-1, BP, VPAD)
    return jnp.transpose(out_pad[:, :B, :VOCAB + 1], (1, 0, 2))      # (B, T-1, V+1)


lsff_forward = jax.jit(_lsff_forward_impl)


# ---------------------------------------------------------------------------
if __name__ == "__main__":
    key = jax.random.PRNGKey(0)
    kp, k1, k2, k3, k4 = jax.random.split(key, 5)

    params = init_params(kp)

    fc_feats = jax.random.normal(k1, (BATCH, FC_FEAT), dtype=jnp.float32)
    att_feats = jax.random.normal(k2, (BATCH, N_OBJ, ATT_FEAT), dtype=jnp.float32)
    attr_labels = jax.random.randint(k3, (BATCH, N_OBJ, 1 + U), 0, NUM_ATTR,
                                     dtype=jnp.int32)
    # non-zero tokens so the data-dependent early stop never triggers
    seq = jax.random.randint(k4, (BATCH, SEQ_LEN), 1, VOCAB + 1, dtype=jnp.int32)

    out = lsff_forward(params, fc_feats, att_feats, attr_labels, seq)
    out = jax.block_until_ready(out)

    assert out.shape == (BATCH, SEQ_LEN - 1, VOCAB + 1)
    assert bool(jnp.all(jnp.isfinite(out)))
    # each row of the log-softmax output must logsumexp to ~0
    lse = jax.scipy.special.logsumexp(out, axis=-1)
    assert bool(jnp.all(jnp.abs(lse) < 1e-4))

    print("KERNEL_OK")
</pallas_src>

<mosaic_0001>
module attributes {stable_mosaic.version = 11 : i64} {
  func.func @_prepare_kernel(%arg0: i32, %arg1: memref<8x24xf32, #tpu.memory_space<vmem>>, %arg2: memref<48x20xf32, #tpu.memory_space<vmem>>, %arg3: memref<48x24xf32, #tpu.memory_space<vmem>>, %arg4: memref<24x32xf32, #tpu.memory_space<vmem>>, %arg5: memref<1x32xf32, #tpu.memory_space<vmem>>, %arg6: memref<20x32xf32, #tpu.memory_space<vmem>>, %arg7: memref<1x32xf32, #tpu.memory_space<vmem>>, %arg8: memref<24x32xf32, #tpu.memory_space<vmem>>, %arg9: memref<1x32xf32, #tpu.memory_space<vmem>>, %arg10: memref<32x32xf32, #tpu.memory_space<vmem>>, %arg11: memref<32x32xf32, #tpu.memory_space<vmem>>, %arg12: memref<1x32xf32, #tpu.memory_space<vmem>>, %arg13: memref<32x16xf32, #tpu.memory_space<vmem>>, %arg14: memref<1x16xf32, #tpu.memory_space<vmem>>, %arg15: memref<32x128xf32, #tpu.memory_space<vmem>>, %arg16: memref<1x128xf32, #tpu.memory_space<vmem>>, %arg17: memref<8x128xf32, #tpu.memory_space<vmem>>, %arg18: memref<48x32xf32, #tpu.memory_space<vmem>>, %arg19: memref<48x16xf32, #tpu.memory_space<vmem>>) attributes {dimension_semantics = [#tpu.dimension_semantics<arbitrary>], iteration_bounds = array<i64: 1>, scalar_prefetch = 0 : i64, scratch_operands = 0 : i64, tpu.core_type = #tpu.core_type<tc>, window_params = [{pipeline_mode = #tpu.pipeline_mode<synchronous>, transform_indices = @transform_0, window_bounds = array<i64: 8, 24>}, {pipeline_mode = #tpu.pipeline_mode<synchronous>, transform_indices = @transform_1, window_bounds = array<i64: 48, 20>}, {pipeline_mode = #tpu.pipeline_mode<synchronous>, transform_indices = @transform_2, window_bounds = array<i64: 48, 24>}, {pipeline_mode = #tpu.pipeline_mode<synchronous>, transform_indices = @transform_3, window_bounds = array<i64: 24, 32>}, {pipeline_mode = #tpu.pipeline_mode<synchronous>, transform_indices = @transform_4, window_bounds = array<i64: 1, 32>}, {pipeline_mode = #tpu.pipeline_mode<synchronous>, transform_indices = @transform_5, window_bounds = array<i64: 20, 32>}, {pipeline_mode = #tpu.pipeline_mode<synchronous>, transform_indices = @transform_6, window_bounds = array<i64: 1, 32>}, {pipeline_mode = #tpu.pipeline_mode<synchronous>, transform_indices = @transform_7, window_bounds = array<i64: 24, 32>}, {pipeline_mode = #tpu.pipeline_mode<synchronous>, transform_indices = @transform_8, window_bounds = array<i64: 1, 32>}, {pipeline_mode = #tpu.pipeline_mode<synchronous>, transform_indices = @transform_9, window_bounds = array<i64: 32, 32>}, {pipeline_mode = #tpu.pipeline_mode<synchronous>, transform_indices = @transform_10, window_bounds = array<i64: 32, 32>}, {pipeline_mode = #tpu.pipeline_mode<synchronous>, transform_indices = @transform_11, window_bounds = array<i64: 1, 32>}, {pipeline_mode = #tpu.pipeline_mode<synchronous>, transform_indices = @transform_12, window_bounds = array<i64: 32, 16>}, {pipeline_mode = #tpu.pipeline_mode<synchronous>, transform_indices = @transform_13, window_bounds = array<i64: 1, 16>}, {pipeline_mode = #tpu.pipeline_mode<synchronous>, transform_indices = @transform_14, window_bounds = array<i64: 32, 128>}, {pipeline_mode = #tpu.pipeline_mode<synchronous>, transform_indices = @transform_15, window_bounds = array<i64: 1, 128>}, {pipeline_mode = #tpu.pipeline_mode<synchronous>, transform_indices = @transform_16, window_bounds = array<i64: 8, 128>}, {pipeline_mode = #tpu.pipeline_mode<synchronous>, transform_indices = @transform_17, window_bounds = array<i64: 48, 32>}, {pipeline_mode = #tpu.pipeline_mode<synchronous>, transform_indices = @transform_18, window_bounds = array<i64: 48, 16>}]} {
    %c0 = arith.constant 0 : index
    %c0_0 = arith.constant 0 : index
    %0 = vector.load %arg1[%c0, %c0_0] : memref<8x24xf32, #tpu.memory_space<vmem>>, vector<8x24xf32>
    %c0_1 = arith.constant 0 : index
    %c0_2 = arith.constant 0 : index
    %1 = vector.load %arg4[%c0_1, %c0_2] : memref<24x32xf32, #tpu.memory_space<vmem>>, vector<24x32xf32>
    %cst = arith.constant dense<0.000000e+00> : vector<8x32xf32>
    %2 = tpu.matmul %0, %1, %cst {dimension_numbers = #tpu.dot_dimension_numbers<[1], [0], [0], [1], [0, 0, 1, 1], [], []>} : vector<8x24xf32>, vector<24x32xf32>, vector<8x32xf32> -> vector<8x32xf32>
    %c0_3 = arith.constant 0 : index
    %c0_4 = arith.constant 0 : index
    %3 = vector.load %arg5[%c0_3, %c0_4] : memref<1x32xf32, #tpu.memory_space<vmem>>, vector<1x32xf32>
    %4 = vector.broadcast %3 : vector<1x32xf32> to vector<8x32xf32>
    %5 = arith.addf %2, %4 : vector<8x32xf32>
    %cst_5 = arith.constant 0.000000e+00 : f32
    %6 = vector.broadcast %cst_5 : f32 to vector<8x32xf32>
    %7 = arith.maximumf %5, %6 : vector<8x32xf32>
    %c0_6 = arith.constant 0 : index
    %c0_7 = arith.constant 0 : index
    %8 = vector.load %arg15[%c0_6, %c0_7] : memref<32x128xf32, #tpu.memory_space<vmem>>, vector<32x128xf32>
    %cst_8 = arith.constant dense<0.000000e+00> : vector<8x128xf32>
    %9 = tpu.matmul %7, %8, %cst_8 {dimension_numbers = #tpu.dot_dimension_numbers<[1], [0], [0], [1], [0, 0, 1, 1], [], []>} : vector<8x32xf32>, vector<32x128xf32>, vector<8x128xf32> -> vector<8x128xf32>
    %c0_9 = arith.constant 0 : index
    %c0_10 = arith.constant 0 : index
    %10 = vector.load %arg16[%c0_9, %c0_10] : memref<1x128xf32, #tpu.memory_space<vmem>>, vector<1x128xf32>
    %11 = vector.broadcast %10 : vector<1x128xf32> to vector<8x128xf32>
    %12 = arith.addf %9, %11 : vector<8x128xf32>
    %c0_11 = arith.constant 0 : index
    %c0_12 = arith.constant 0 : index
    %13 = vector.load %arg17[%c0_11, %c0_12] : memref<8x128xf32, #tpu.memory_space<vmem>>, vector<8x128xf32>
    tpu.vector_store %arg17[%c0_11, %c0_12], %12 {strides = array<i32>} : memref<8x128xf32, #tpu.memory_space<vmem>>, vector<8x128xf32>,
    %c0_13 = arith.constant 0 : index
    %c0_14 = arith.constant 0 : index
    %14 = vector.load %arg2[%c0_13, %c0_14] : memref<48x20xf32, #tpu.memory_space<vmem>>, vector<48x20xf32>
    %c0_15 = arith.constant 0 : index
    %c0_16 = arith.constant 0 : index
    %15 = vector.load %arg6[%c0_15, %c0_16] : memref<20x32xf32, #tpu.memory_space<vmem>>, vector<20x32xf32>
    %cst_17 = arith.constant dense<0.000000e+00> : vector<48x32xf32>
    %16 = tpu.matmul %14, %15, %cst_17 {dimension_numbers = #tpu.dot_dimension_numbers<[1], [0], [0], [1], [0, 0, 1, 1], [], []>} : vector<48x20xf32>, vector<20x32xf32>, vector<48x32xf32> -> vector<48x32xf32>
    %c0_18 = arith.constant 0 : index
    %c0_19 = arith.constant 0 : index
    %17 = vector.load %arg7[%c0_18, %c0_19] : memref<1x32xf32, #tpu.memory_space<vmem>>, vector<1x32xf32>
    %18 = vector.broadcast %17 : vector<1x32xf32> to vector<48x32xf32>
    %19 = arith.addf %16, %18 : vector<48x32xf32>
    %cst_20 = arith.constant 0.000000e+00 : f32
    %20 = vector.broadcast %cst_20 : f32 to vector<48x32xf32>
    %21 = arith.maximumf %19, %20 : vector<48x32xf32>
    %c0_21 = arith.constant 0 : index
    %c0_22 = arith.constant 0 : index
    %22 = vector.load %arg3[%c0_21, %c0_22] : memref<48x24xf32, #tpu.memory_space<vmem>>, vector<48x24xf32>
    %c0_23 = arith.constant 0 : index
    %c0_24 = arith.constant 0 : index
    %23 = vector.load %arg8[%c0_23, %c0_24] : memref<24x32xf32, #tpu.memory_space<vmem>>, vector<24x32xf32>
    %cst_25 = arith.constant dense<0.000000e+00> : vector<48x32xf32>
    %24 = tpu.matmul %22, %23, %cst_25 {dimension_numbers = #tpu.dot_dimension_numbers<[1], [0], [0], [1], [0, 0, 1, 1], [], []>} : vector<48x24xf32>, vector<24x32xf32>, vector<48x32xf32> -> vector<48x32xf32>
    %c0_26 = arith.constant 0 : index
    %c0_27 = arith.constant 0 : index
    %25 = vector.load %arg9[%c0_26, %c0_27] : memref<1x32xf32, #tpu.memory_space<vmem>>, vector<1x32xf32>
    %26 = vector.broadcast %25 : vector<1x32xf32> to vector<48x32xf32>
    %27 = arith.addf %24, %26 : vector<48x32xf32>
    %cst_28 = arith.constant 0.000000e+00 : f32
    %28 = vector.broadcast %cst_28 : f32 to vector<48x32xf32>
    %29 = arith.maximumf %27, %28 : vector<48x32xf32>
    %c0_29 = arith.constant 0 : index
    %c0_30 = arith.constant 0 : index
    %30 = vector.load %arg10[%c0_29, %c0_30] : memref<32x32xf32, #tpu.memory_space<vmem>>, vector<32x32xf32>
    %cst_31 = arith.constant dense<0.000000e+00> : vector<48x32xf32>
    %31 = tpu.matmul %21, %30, %cst_31 {dimension_numbers = #tpu.dot_dimension_numbers<[1], [0], [0], [1], [0, 0, 1, 1], [], []>} : vector<48x32xf32>, vector<32x32xf32>, vector<48x32xf32> -> vector<48x32xf32>
    %c0_32 = arith.constant 0 : index
    %c0_33 = arith.constant 0 : index
    %32 = vector.load %arg11[%c0_32, %c0_33] : memref<32x32xf32, #tpu.memory_space<vmem>>, vector<32x32xf32>
    %cst_34 = arith.constant dense<0.000000e+00> : vector<48x32xf32>
    %33 = tpu.matmul %29, %32, %cst_34 {dimension_numbers = #tpu.dot_dimension_numbers<[1], [0], [0], [1], [0, 0, 1, 1], [], []>} : vector<48x32xf32>, vector<32x32xf32>, vector<48x32xf32> -> vector<48x32xf32>
    %34 = arith.addf %31, %33 : vector<48x32xf32>
    %c0_35 = arith.constant 0 : index
    %c0_36 = arith.constant 0 : index
    %35 = vector.load %arg12[%c0_35, %c0_36] : memref<1x32xf32, #tpu.memory_space<vmem>>, vector<1x32xf32>
    %36 = vector.broadcast %35 : vector<1x32xf32> to vector<48x32xf32>
    %37 = arith.addf %34, %36 : vector<48x32xf32>
    %cst_37 = arith.constant 0.000000e+00 : f32
    %38 = vector.broadcast %cst_37 : f32 to vector<48x32xf32>
    %39 = arith.maximumf %37, %38 : vector<48x32xf32>
    %40 = arith.addf %39, %29 : vector<48x32xf32>
    %c0_38 = arith.constant 0 : index
    %c0_39 = arith.constant 0 : index
    %41 = vector.load %arg18[%c0_38, %c0_39] : memref<48x32xf32, #tpu.memory_space<vmem>>, vector<48x32xf32>
    tpu.vector_store %arg18[%c0_38, %c0_39], %40 {strides = array<i32>} : memref<48x32xf32, #tpu.memory_space<vmem>>, vector<48x32xf32>,
    %c0_40 = arith.constant 0 : index
    %c0_41 = arith.constant 0 : index
    %42 = vector.load %arg13[%c0_40, %c0_41] : memref<32x16xf32, #tpu.memory_space<vmem>>, vector<32x16xf32>
    %cst_42 = arith.constant dense<0.000000e+00> : vector<48x16xf32>
    %43 = tpu.matmul %40, %42, %cst_42 {dimension_numbers = #tpu.dot_dimension_numbers<[1], [0], [0], [1], [0, 0, 1, 1], [], []>} : vector<48x32xf32>, vector<32x16xf32>, vector<48x16xf32> -> vector<48x16xf32>
    %c0_43 = arith.constant 0 : index
    %c0_44 = arith.constant 0 : index
    %44 = vector.load %arg14[%c0_43, %c0_44] : memref<1x16xf32, #tpu.memory_space<vmem>>, vector<1x16xf32>
    %45 = vector.broadcast %44 : vector<1x16xf32> to vector<48x16xf32>
    %46 = arith.addf %43, %45 : vector<48x16xf32>
    %c0_45 = arith.constant 0 : index
    %c0_46 = arith.constant 0 : index
    %47 = vector.load %arg19[%c0_45, %c0_46] : memref<48x16xf32, #tpu.memory_space<vmem>>, vector<48x16xf32>
    tpu.vector_store %arg19[%c0_45, %c0_46], %46 {strides = array<i32>} : memref<48x16xf32, #tpu.memory_space<vmem>>, vector<48x16xf32>,
    return
  }
  func.func @transform_0(%arg0: i32) -> (i32, i32) {
    %c0_i32 = arith.constant 0 : i32
    %c0_i32_0 = arith.constant 0 : i32
    %c0_i32_1 = arith.constant 0 : i32
    return %c0_i32, %c0_i32_0 : i32, i32
  }
  func.func @transform_1(%arg0: i32) -> (i32, i32) {
    %c0_i32 = arith.constant 0 : i32
    %c0_i32_0 = arith.constant 0 : i32
    %c0_i32_1 = arith.constant 0 : i32
    return %c0_i32, %c0_i32_0 : i32, i32
  }
  func.func @transform_2(%arg0: i32) -> (i32, i32) {
    %c0_i32 = arith.constant 0 : i32
    %c0_i32_0 = arith.constant 0 : i32
    %c0_i32_1 = arith.constant 0 : i32
    return %c0_i32, %c0_i32_0 : i32, i32
  }
  func.func @transform_3(%arg0: i32) -> (i32, i32) {
    %c0_i32 = arith.constant 0 : i32
    %c0_i32_0 = arith.constant 0 : i32
    %c0_i32_1 = arith.constant 0 : i32
    return %c0_i32, %c0_i32_0 : i32, i32
  }
  func.func @transform_4(%arg0: i32) -> (i32, i32) {
    %c0_i32 = arith.constant 0 : i32
    %c0_i32_0 = arith.constant 0 : i32
    %c0_i32_1 = arith.constant 0 : i32
    return %c0_i32, %c0_i32_0 : i32, i32
  }
  func.func @transform_5(%arg0: i32) -> (i32, i32) {
    %c0_i32 = arith.constant 0 : i32
    %c0_i32_0 = arith.constant 0 : i32
    %c0_i32_1 = arith.constant 0 : i32
    return %c0_i32, %c0_i32_0 : i32, i32
  }
  func.func @transform_6(%arg0: i32) -> (i32, i32) {
    %c0_i32 = arith.constant 0 : i32
    %c0_i32_0 = arith.constant 0 : i32
    %c0_i32_1 = arith.constant 0 : i32
    return %c0_i32, %c0_i32_0 : i32, i32
  }
  func.func @transform_7(%arg0: i32) -> (i32, i32) {
    %c0_i32 = arith.constant 0 : i32
    %c0_i32_0 = arith.constant 0 : i32
    %c0_i32_1 = arith.constant 0 : i32
    return %c0_i32, %c0_i32_0 : i32, i32
  }
  func.func @transform_8(%arg0: i32) -> (i32, i32) {
    %c0_i32 = arith.constant 0 : i32
    %c0_i32_0 = arith.constant 0 : i32
    %c0_i32_1 = arith.constant 0 : i32
    return %c0_i32, %c0_i32_0 : i32, i32
  }
  func.func @transform_9(%arg0: i32) -> (i32, i32) {
    %c0_i32 = arith.constant 0 : i32
    %c0_i32_0 = arith.constant 0 : i32
    %c0_i32_1 = arith.constant 0 : i32
    return %c0_i32, %c0_i32_0 : i32, i32
  }
  func.func @transform_10(%arg0: i32) -> (i32, i32) {
    %c0_i32 = arith.constant 0 : i32
    %c0_i32_0 = arith.constant 0 : i32
    %c0_i32_1 = arith.constant 0 : i32
    return %c0_i32, %c0_i32_0 : i32, i32
  }
  func.func @transform_11(%arg0: i32) -> (i32, i32) {
    %c0_i32 = arith.constant 0 : i32
    %c0_i32_0 = arith.constant 0 : i32
    %c0_i32_1 = arith.constant 0 : i32
    return %c0_i32, %c0_i32_0 : i32, i32
  }
  func.func @transform_12(%arg0: i32) -> (i32, i32) {
    %c0_i32 = arith.constant 0 : i32
    %c0_i32_0 = arith.constant 0 : i32
    %c0_i32_1 = arith.constant 0 : i32
    return %c0_i32, %c0_i32_0 : i32, i32
  }
  func.func @transform_13(%arg0: i32) -> (i32, i32) {
    %c0_i32 = arith.constant 0 : i32
    %c0_i32_0 = arith.constant 0 : i32
    %c0_i32_1 = arith.constant 0 : i32
    return %c0_i32, %c0_i32_0 : i32, i32
  }
  func.func @transform_14(%arg0: i32) -> (i32, i32) {
    %c0_i32 = arith.constant 0 : i32
    %c0_i32_0 = arith.constant 0 : i32
    %c0_i32_1 = arith.constant 0 : i32
    return %c0_i32, %c0_i32_0 : i32, i32
  }
  func.func @transform_15(%arg0: i32) -> (i32, i32) {
    %c0_i32 = arith.constant 0 : i32
    %c0_i32_0 = arith.constant 0 : i32
    %c0_i32_1 = arith.constant 0 : i32
    return %c0_i32, %c0_i32_0 : i32, i32
  }
  func.func @transform_16(%arg0: i32) -> (i32, i32) {
    %c0_i32 = arith.constant 0 : i32
    %c0_i32_0 = arith.constant 0 : i32
    %c0_i32_1 = arith.constant 0 : i32
    return %c0_i32, %c0_i32_0 : i32, i32
  }
  func.func @transform_17(%arg0: i32) -> (i32, i32) {
    %c0_i32 = arith.constant 0 : i32
    %c0_i32_0 = arith.constant 0 : i32
    %c0_i32_1 = arith.constant 0 : i32
    return %c0_i32, %c0_i32_0 : i32, i32
  }
  func.func @transform_18(%arg0: i32) -> (i32, i32) {
    %c0_i32 = arith.constant 0 : i32
    %c0_i32_0 = arith.constant 0 : i32
    %c0_i32_1 = arith.constant 0 : i32
    return %c0_i32, %c0_i32_0 : i32, i32
  }
}

module attributes {stable_mosaic.version = 11 : i64} {
  func.func @_decode_kernel(%arg0: i32, %arg1: memref<7xi32, #tpu.memory_space<smem>>, %arg2: memref<1x8x16xf32, #tpu.memory_space<vmem>>, %arg3: memref<8x128xf32, #tpu.memory_space<vmem>>, %arg4: memref<8x6x32xf32, #tpu.memory_space<vmem>>, %arg5: memref<8x6x16xf32, #tpu.memory_space<vmem>>, %arg6: memref<32x128xf32, #tpu.memory_space<vmem>>, %arg7: memref<16x128xf32, #tpu.memory_space<vmem>>, %arg8: memref<32x128xf32, #tpu.memory_space<vmem>>, %arg9: memref<32x128xf32, #tpu.memory_space<vmem>>, %arg10: memref<32x128xf32, #tpu.memory_space<vmem>>, %arg11: memref<32x128xf32, #tpu.memory_space<vmem>>, %arg12: memref<1x128xf32, #tpu.memory_space<vmem>>, %arg13: memref<32x16xf32, #tpu.memory_space<vmem>>, %arg14: memref<1x16xf32, #tpu.memory_space<vmem>>, %arg15: memref<1x1x16xf32, #tpu.memory_space<vmem>>, %arg16: memref<32x128xf32, #tpu.memory_space<vmem>>, %arg17: memref<1x128xf32, #tpu.memory_space<vmem>>, %arg18: memref<1x8x128xf32, #tpu.memory_space<vmem>>, %arg19: memref<8x32xf32, #tpu.memory_space<vmem>>, %arg20: memref<8x32xf32, #tpu.memory_space<vmem>>, %arg21: memref<8x32xf32, #tpu.memory_space<vmem>>, %arg22: memref<8x32xf32, #tpu.memory_space<vmem>>) attributes {dimension_semantics = [#tpu.dimension_semantics<arbitrary>], iteration_bounds = array<i64: 7>, scalar_prefetch = 1 : i64, scratch_operands = 4 : i64, tpu.core_type = #tpu.core_type<tc>, window_params = [{transform_indices = @transform_0, window_bounds = array<i64: 1, 8, 16>}, {pipeline_mode = #tpu.pipeline_mode<synchronous>, transform_indices = @transform_1, window_bounds = array<i64: 8, 128>}, {pipeline_mode = #tpu.pipeline_mode<synchronous>, transform_indices = @transform_2, window_bounds = array<i64: 8, 6, 32>}, {pipeline_mode = #tpu.pipeline_mode<synchronous>, transform_indices = @transform_3, window_bounds = array<i64: 8, 6, 16>}, {pipeline_mode = #tpu.pipeline_mode<synchronous>, transform_indices = @transform_4, window_bounds = array<i64: 32, 128>}, {pipeline_mode = #tpu.pipeline_mode<synchronous>, transform_indices = @transform_5, window_bounds = array<i64: 16, 128>}, {pipeline_mode = #tpu.pipeline_mode<synchronous>, transform_indices = @transform_6, window_bounds = array<i64: 32, 128>}, {pipeline_mode = #tpu.pipeline_mode<synchronous>, transform_indices = @transform_7, window_bounds = array<i64: 32, 128>}, {pipeline_mode = #tpu.pipeline_mode<synchronous>, transform_indices = @transform_8, window_bounds = array<i64: 32, 128>}, {pipeline_mode = #tpu.pipeline_mode<synchronous>, transform_indices = @transform_9, window_bounds = array<i64: 32, 128>}, {pipeline_mode = #tpu.pipeline_mode<synchronous>, transform_indices = @transform_10, window_bounds = array<i64: 1, 128>}, {pipeline_mode = #tpu.pipeline_mode<synchronous>, transform_indices = @transform_11, window_bounds = array<i64: 32, 16>}, {pipeline_mode = #tpu.pipeline_mode<synchronous>, transform_indices = @transform_12, window_bounds = array<i64: 1, 16>}, {pipeline_mode = #tpu.pipeline_mode<synchronous>, transform_indices = @transform_13, window_bounds = array<i64: 1, 1, 16>}, {pipeline_mode = #tpu.pipeline_mode<synchronous>, transform_indices = @transform_14, window_bounds = array<i64: 32, 128>}, {pipeline_mode = #tpu.pipeline_mode<synchronous>, transform_indices = @transform_15, window_bounds = array<i64: 1, 128>}, {transform_indices = @transform_16, window_bounds = array<i64: 1, 8, 128>}]} {
    %c0_i32 = arith.constant 0 : i32
    %0 = arith.cmpi eq, %arg0, %c0_i32 : i32
    %1 = arith.extui %0 : i1 to i32
    %c0_i32_0 = arith.constant 0 : i32
    %2 = arith.cmpi ne, %1, %c0_i32_0 : i32
    scf.if %2 {
      %cst = arith.constant 0.000000e+00 : f32
      %11 = vector.broadcast %cst : f32 to vector<8x32xf32>
      %c0 = arith.constant 0 : index
      %c0_4 = arith.constant 0 : index
      %12 = vector.load %arg19[%c0, %c0_4] : memref<8x32xf32, #tpu.memory_space<vmem>>, vector<8x32xf32>
      tpu.vector_store %arg19[%c0, %c0_4], %11 {strides = array<i32>} : memref<8x32xf32, #tpu.memory_space<vmem>>, vector<8x32xf32>,
      %cst_5 = arith.constant 0.000000e+00 : f32
      %13 = vector.broadcast %cst_5 : f32 to vector<8x32xf32>
      %c0_6 = arith.constant 0 : index
      %c0_7 = arith.constant 0 : index
      %14 = vector.load %arg20[%c0_6, %c0_7] : memref<8x32xf32, #tpu.memory_space<vmem>>, vector<8x32xf32>
      tpu.vector_store %arg20[%c0_6, %c0_7], %13 {strides = array<i32>} : memref<8x32xf32, #tpu.memory_space<vmem>>, vector<8x32xf32>,
      %cst_8 = arith.constant 0.000000e+00 : f32
      %15 = vector.broadcast %cst_8 : f32 to vector<8x32xf32>
      %c0_9 = arith.constant 0 : index
      %c0_10 = arith.constant 0 : index
      %16 = vector.load %arg21[%c0_9, %c0_10] : memref<8x32xf32, #tpu.memory_space<vmem>>, vector<8x32xf32>
      tpu.vector_store %arg21[%c0_9, %c0_10], %15 {strides = array<i32>} : memref<8x32xf32, #tpu.memory_space<vmem>>, vector<8x32xf32>,
      %cst_11 = arith.constant 0.000000e+00 : f32
      %17 = vector.broadcast %cst_11 : f32 to vector<8x32xf32>
      %c0_12 = arith.constant 0 : index
      %c0_13 = arith.constant 0 : index
      %18 = vector.load %arg22[%c0_12, %c0_13] : memref<8x32xf32, #tpu.memory_space<vmem>>, vector<8x32xf32>
      tpu.vector_store %arg22[%c0_12, %c0_13], %17 {strides = array<i32>} : memref<8x32xf32, #tpu.memory_space<vmem>>, vector<8x32xf32>,
    } else {
    }
    %3 = arith.index_cast %arg0 : i32 to index
    %4 = memref.load %arg1[%3] : memref<7xi32, #tpu.memory_space<smem>>
    %c0_i32_1 = arith.constant 0 : i32
    %5 = arith.cmpi eq, %4, %c0_i32_1 : i32
    %6 = arith.extui %5 : i1 to i32
    %c0_i32_2 = arith.constant 0 : i32
    %7 = arith.cmpi ne, %6, %c0_i32_2 : i32
    scf.if %7 {
      %cst = arith.constant 0.000000e+00 : f32
      %11 = vector.broadcast %cst : f32 to vector<1x8x128xf32>
      %c0 = arith.constant 0 : index
      %c0_4 = arith.constant 0 : index
      %c0_5 = arith.constant 0 : index
      %12 = vector.load %arg18[%c0, %c0_4, %c0_5] : memref<1x8x128xf32, #tpu.memory_space<vmem>>, vector<1x8x128xf32>
      tpu.vector_store %arg18[%c0, %c0_4, %c0_5], %11 {strides = array<i32>} : memref<1x8x128xf32, #tpu.memory_space<vmem>>, vector<1x8x128xf32>,
    } else {
    }
    %c1_i32 = arith.constant 1 : i32
    %8 = arith.cmpi eq, %4, %c1_i32 : i32
    %9 = arith.extui %8 : i1 to i32
    %c0_i32_3 = arith.constant 0 : i32
    %10 = arith.cmpi ne, %9, %c0_i32_3 : i32
    scf.if %10 {
      %c0 = arith.constant 0 : index
      %c0_4 = arith.constant 0 : index
      %c0_5 = arith.constant 0 : index
      %11 = vector.load %arg2[%c0, %c0_4, %c0_5] : memref<1x8x16xf32, #tpu.memory_space<vmem>>, vector<1x8x16xf32>
      %12 = vector.shape_cast %11 : vector<1x8x16xf32> to vector<8x16xf32>
      %c0_6 = arith.constant 0 : index
      %c0_7 = arith.constant 0 : index
      %13 = vector.load %arg19[%c0_6, %c0_7] : memref<8x32xf32, #tpu.memory_space<vmem>>, vector<8x32xf32>
      %c0_8 = arith.constant 0 : index
      %c0_9 = arith.constant 0 : index
      %14 = vector.load %arg20[%c0_8, %c0_9] : memref<8x32xf32, #tpu.memory_space<vmem>>, vector<8x32xf32>
      %c0_10 = arith.constant 0 : index
      %c0_11 = arith.constant 0 : index
      %15 = vector.load %arg21[%c0_10, %c0_11] : memref<8x32xf32, #tpu.memory_space<vmem>>, vector<8x32xf32>
      %c0_12 = arith.constant 0 : index
      %c0_13 = arith.constant 0 : index
      %16 = vector.load %arg22[%c0_12, %c0_13] : memref<8x32xf32, #tpu.memory_space<vmem>>, vector<8x32xf32>
      %c0_14 = arith.constant 0 : index
      %c0_15 = arith.constant 0 : index
      %17 = vector.load %arg6[%c0_14, %c0_15] : memref<32x128xf32, #tpu.memory_space<vmem>>, vector<32x128xf32>
      %cst = arith.constant dense<0.000000e+00> : vector<8x128xf32>
      %18 = tpu.matmul %15, %17, %cst {dimension_numbers = #tpu.dot_dimension_numbers<[1], [0], [0], [1], [0, 0, 1, 1], [], []>} : vector<8x32xf32>, vector<32x128xf32>, vector<8x128xf32> -> vector<8x128xf32>
      %c0_16 = arith.constant 0 : index
      %c0_17 = arith.constant 0 : index
      %19 = vector.load %arg7[%c0_16, %c0_17] : memref<16x128xf32, #tpu.memory_space<vmem>>, vector<16x128xf32>
      %cst_18 = arith.constant dense<0.000000e+00> : vector<8x128xf32>
      %20 = tpu.matmul %12, %19, %cst_18 {dimension_numbers = #tpu.dot_dimension_numbers<[1], [0], [0], [1], [0, 0, 1, 1], [], []>} : vector<8x16xf32>, vector<16x128xf32>, vector<8x128xf32> -> vector<8x128xf32>
      %21 = arith.addf %18, %20 : vector<8x128xf32>
      %c0_19 = arith.constant 0 : index
      %c0_20 = arith.constant 0 : index
      %22 = vector.load %arg8[%c0_19, %c0_20] : memref<32x128xf32, #tpu.memory_space<vmem>>, vector<32x128xf32>
      %cst_21 = arith.constant dense<0.000000e+00> : vector<8x128xf32>
      %23 = tpu.matmul %13, %22, %cst_21 {dimension_numbers = #tpu.dot_dimension_numbers<[1], [0], [0], [1], [0, 0, 1, 1], [], []>} : vector<8x32xf32>, vector<32x128xf32>, vector<8x128xf32> -> vector<8x128xf32>
      %24 = arith.addf %21, %23 : vector<8x128xf32>
      %c0_22 = arith.constant 0 : index
      %c0_23 = arith.constant 0 : index
      %25 = vector.load %arg3[%c0_22, %c0_23] : memref<8x128xf32, #tpu.memory_space<vmem>>, vector<8x128xf32>
      %26 = arith.addf %24, %25 : vector<8x128xf32>
      %27 = vector.extract_strided_slice %26 {offsets = [0, 0], sizes = [8, 32], strides = [1, 1]} : vector<8x128xf32> to vector<8x32xf32>
      %28 = arith.negf %27 : vector<8x32xf32>
      %29 = math.exp %28 : vector<8x32xf32>
      %cst_24 = arith.constant 1.000000e+00 : f32
      %30 = vector.broadcast %cst_24 : f32 to vector<8x32xf32>
      %31 = arith.addf %30, %29 : vector<8x32xf32>
      %32 = arith.divf %30, %31 : vector<8x32xf32>
      %33 = vector.extract_strided_slice %26 {offsets = [0, 32], sizes = [8, 32], strides = [1, 1]} : vector<8x128xf32> to vector<8x32xf32>
      %34 = arith.negf %33 : vector<8x32xf32>
      %35 = math.exp %34 : vector<8x32xf32>
      %cst_25 = arith.constant 1.000000e+00 : f32
      %36 = vector.broadcast %cst_25 : f32 to vector<8x32xf32>
      %37 = arith.addf %36, %35 : vector<8x32xf32>
      %38 = arith.divf %36, %37 : vector<8x32xf32>
      %39 = vector.extract_strided_slice %26 {offsets = [0, 64], sizes = [8, 32], strides = [1, 1]} : vector<8x128xf32> to vector<8x32xf32>
      %40 = math.tanh %39 : vector<8x32xf32>
      %41 = vector.extract_strided_slice %26 {offsets = [0, 96], sizes = [8, 32], strides = [1, 1]} : vector<8x128xf32> to vector<8x32xf32>
      %42 = arith.negf %41 : vector<8x32xf32>
      %43 = math.exp %42 : vector<8x32xf32>
      %cst_26 = arith.constant 1.000000e+00 : f32
      %44 = vector.broadcast %cst_26 : f32 to vector<8x32xf32>
      %45 = arith.addf %44, %43 : vector<8x32xf32>
      %46 = arith.divf %44, %45 : vector<8x32xf32>
      %47 = arith.mulf %38, %14 : vector<8x32xf32>
      %48 = arith.mulf %32, %40 : vector<8x32xf32>
      %49 = arith.addf %47, %48 : vector<8x32xf32>
      %50 = math.tanh %49 : vector<8x32xf32>
      %51 = arith.mulf %46, %50 : vector<8x32xf32>
      %c0_27 = arith.constant 0 : index
      %c0_28 = arith.constant 0 : index
      %52 = vector.load %arg13[%c0_27, %c0_28] : memref<32x16xf32, #tpu.memory_space<vmem>>, vector<32x16xf32>
      %cst_29 = arith.constant dense<0.000000e+00> : vector<8x16xf32>
      %53 = tpu.matmul %51, %52, %cst_29 {dimension_numbers = #tpu.dot_dimension_numbers<[1], [0], [0], [1], [0, 0, 1, 1], [], []>} : vector<8x32xf32>, vector<32x16xf32>, vector<8x16xf32> -> vector<8x16xf32>
      %c0_30 = arith.constant 0 : index
      %c0_31 = arith.constant 0 : index
      %54 = vector.load %arg14[%c0_30, %c0_31] : memref<1x16xf32, #tpu.memory_space<vmem>>, vector<1x16xf32>
      %55 = vector.broadcast %54 : vector<1x16xf32> to vector<8x16xf32>
      %56 = arith.addf %53, %55 : vector<8x16xf32>
      %c0_32 = arith.constant 0 : index
      %c0_33 = arith.constant 0 : index
      %c0_34 = arith.constant 0 : index
      %57 = vector.load %arg5[%c0_32, %c0_33, %c0_34] : memref<8x6x16xf32, #tpu.memory_space<vmem>>, vector<8x6x16xf32>
      %58 = vector.shape_cast %56 : vector<8x16xf32> to vector<8x1x16xf32>
      %59 = vector.broadcast %58 : vector<8x1x16xf32> to vector<8x6x16xf32>
      %60 = arith.addf %57, %59 : vector<8x6x16xf32>
      %61 = math.tanh %60 : vector<8x6x16xf32>
      %c0_35 = arith.constant 0 : index
      %c0_36 = arith.constant 0 : index
      %c0_37 = arith.constant 0 : index
      %62 = vector.load %arg15[%c0_35, %c0_36, %c0_37] : memref<1x1x16xf32, #tpu.memory_space<vmem>>, vector<1x1x16xf32>
      %63 = vector.broadcast %62 : vector<1x1x16xf32> to vector<8x6x16xf32>
      %64 = arith.mulf %61, %63 : vector<8x6x16xf32>
      %cst_38 = arith.constant dense<0.000000e+00> : vector<8x6xf32>
      %65 = vector.multi_reduction <add>, %64, %cst_38 [2] : vector<8x6x16xf32> to vector<8x6xf32>
      %cst_39 = arith.constant dense<0xFF800000> : vector<8xf32>
      %66 = vector.multi_reduction <maximumf>, %65, %cst_39 [1] : vector<8x6xf32> to vector<8xf32>
      %67 = vector.shape_cast %66 : vector<8xf32> to vector<8x1xf32>
      %68 = vector.broadcast %67 : vector<8x1xf32> to vector<8x6xf32>
      %69 = arith.subf %65, %68 : vector<8x6xf32>
      %70 = math.exp %69 : vector<8x6xf32>
      %cst_40 = arith.constant dense<0.000000e+00> : vector<8xf32>
      %71 = vector.multi_reduction <add>, %70, %cst_40 [1] : vector<8x6xf32> to vector<8xf32>
      %72 = vector.shape_cast %71 : vector<8xf32> to vector<8x1xf32>
      %73 = vector.broadcast %72 : vector<8x1xf32> to vector<8x6xf32>
      %74 = arith.divf %70, %73 : vector<8x6xf32>
      %75 = vector.shape_cast %74 : vector<8x6xf32> to vector<8x6x1xf32>
      %c0_41 = arith.constant 0 : index
      %c0_42 = arith.constant 0 : index
      %c0_43 = arith.constant 0 : index
      %76 = vector.load %arg4[%c0_41, %c0_42, %c0_43] : memref<8x6x32xf32, #tpu.memory_space<vmem>>, vector<8x6x32xf32>
      %77 = vector.broadcast %75 : vector<8x6x1xf32> to vector<8x6x32xf32>
      %78 = arith.mulf %77, %76 : vector<8x6x32xf32>
      %cst_44 = arith.constant dense<0.000000e+00> : vector<8x32xf32>
      %79 = vector.multi_reduction <add>, %78, %cst_44 [1] : vector<8x6x32xf32> to vector<8x32xf32>
      %c0_45 = arith.constant 0 : index
      %c0_46 = arith.constant 0 : index
      %80 = vector.load %arg9[%c0_45, %c0_46] : memref<32x128xf32, #tpu.memory_space<vmem>>, vector<32x128xf32>
      %cst_47 = arith.constant dense<0.000000e+00> : vector<8x128xf32>
      %81 = tpu.matmul %79, %80, %cst_47 {dimension_numbers = #tpu.dot_dimension_numbers<[1], [0], [0], [1], [0, 0, 1, 1], [], []>} : vector<8x32xf32>, vector<32x128xf32>, vector<8x128xf32> -> vector<8x128xf32>
      %c0_48 = arith.constant 0 : index
      %c0_49 = arith.constant 0 : index
      %82 = vector.load %arg10[%c0_48, %c0_49] : memref<32x128xf32, #tpu.memory_space<vmem>>, vector<32x128xf32>
      %cst_50 = arith.constant dense<0.000000e+00> : vector<8x128xf32>
      %83 = tpu.matmul %51, %82, %cst_50 {dimension_numbers = #tpu.dot_dimension_numbers<[1], [0], [0], [1], [0, 0, 1, 1], [], []>} : vector<8x32xf32>, vector<32x128xf32>, vector<8x128xf32> -> vector<8x128xf32>
      %84 = arith.addf %81, %83 : vector<8x128xf32>
      %c0_51 = arith.constant 0 : index
      %c0_52 = arith.constant 0 : index
      %85 = vector.load %arg11[%c0_51, %c0_52] : memref<32x128xf32, #tpu.memory_space<vmem>>, vector<32x128xf32>
      %cst_53 = arith.constant dense<0.000000e+00> : vector<8x128xf32>
      %86 = tpu.matmul %15, %85, %cst_53 {dimension_numbers = #tpu.dot_dimension_numbers<[1], [0], [0], [1], [0, 0, 1, 1], [], []>} : vector<8x32xf32>, vector<32x128xf32>, vector<8x128xf32> -> vector<8x128xf32>
      %87 = arith.addf %84, %86 : vector<8x128xf32>
      %c0_54 = arith.constant 0 : index
      %c0_55 = arith.constant 0 : index
      %88 = vector.load %arg12[%c0_54, %c0_55] : memref<1x128xf32, #tpu.memory_space<vmem>>, vector<1x128xf32>
      %89 = vector.broadcast %88 : vector<1x128xf32> to vector<8x128xf32>
      %90 = arith.addf %87, %89 : vector<8x128xf32>
      %91 = vector.extract_strided_slice %90 {offsets = [0, 0], sizes = [8, 32], strides = [1, 1]} : vector<8x128xf32> to vector<8x32xf32>
      %92 = arith.negf %91 : vector<8x32xf32>
      %93 = math.exp %92 : vector<8x32xf32>
      %cst_56 = arith.constant 1.000000e+00 : f32
      %94 = vector.broadcast %cst_56 : f32 to vector<8x32xf32>
      %95 = arith.addf %94, %93 : vector<8x32xf32>
      %96 = arith.divf %94, %95 : vector<8x32xf32>
      %97 = vector.extract_strided_slice %90 {offsets = [0, 32], sizes = [8, 32], strides = [1, 1]} : vector<8x128xf32> to vector<8x32xf32>
      %98 = arith.negf %97 : vector<8x32xf32>
      %99 = math.exp %98 : vector<8x32xf32>
      %cst_57 = arith.constant 1.000000e+00 : f32
      %100 = vector.broadcast %cst_57 : f32 to vector<8x32xf32>
      %101 = arith.addf %100, %99 : vector<8x32xf32>
      %102 = arith.divf %100, %101 : vector<8x32xf32>
      %103 = vector.extract_strided_slice %90 {offsets = [0, 64], sizes = [8, 32], strides = [1, 1]} : vector<8x128xf32> to vector<8x32xf32>
      %104 = math.tanh %103 : vector<8x32xf32>
      %105 = vector.extract_strided_slice %90 {offsets = [0, 96], sizes = [8, 32], strides = [1, 1]} : vector<8x128xf32> to vector<8x32xf32>
      %106 = arith.negf %105 : vector<8x32xf32>
      %107 = math.exp %106 : vector<8x32xf32>
      %cst_58 = arith.constant 1.000000e+00 : f32
      %108 = vector.broadcast %cst_58 : f32 to vector<8x32xf32>
      %109 = arith.addf %108, %107 : vector<8x32xf32>
      %110 = arith.divf %108, %109 : vector<8x32xf32>
      %111 = arith.mulf %102, %16 : vector<8x32xf32>
      %112 = arith.mulf %96, %104 : vector<8x32xf32>
      %113 = arith.addf %111, %112 : vector<8x32xf32>
      %114 = math.tanh %113 : vector<8x32xf32>
      %115 = arith.mulf %110, %114 : vector<8x32xf32>
      %c0_59 = arith.constant 0 : index
      %c0_60 = arith.constant 0 : index
      %116 = vector.load %arg16[%c0_59, %c0_60] : memref<32x128xf32, #tpu.memory_space<vmem>>, vector<32x128xf32>
      %cst_61 = arith.constant dense<0.000000e+00> : vector<8x128xf32>
      %117 = tpu.matmul %115, %116, %cst_61 {dimension_numbers = #tpu.dot_dimension_numbers<[1], [0], [0], [1], [0, 0, 1, 1], [], []>} : vector<8x32xf32>, vector<32x128xf32>, vector<8x128xf32> -> vector<8x128xf32>
      %c0_62 = arith.constant 0 : index
      %c0_63 = arith.constant 0 : index
      %118 = vector.load %arg17[%c0_62, %c0_63] : memref<1x128xf32, #tpu.memory_space<vmem>>, vector<1x128xf32>
      %119 = vector.broadcast %118 : vector<1x128xf32> to vector<8x128xf32>
      %120 = arith.addf %117, %119 : vector<8x128xf32>
      %cst_64 = arith.constant dense<0xFF800000> : vector<8xf32>
      %121 = vector.multi_reduction <maximumf>, %120, %cst_64 [1] : vector<8x128xf32> to vector<8xf32>
      %122 = vector.shape_cast %121 : vector<8xf32> to vector<8x1xf32>
      %123 = vector.broadcast %122 : vector<8x1xf32> to vector<8x128xf32>
      %124 = arith.subf %120, %123 : vector<8x128xf32>
      %125 = math.exp %124 : vector<8x128xf32>
      %cst_65 = arith.constant dense<0.000000e+00> : vector<8xf32>
      %126 = vector.multi_reduction <add>, %125, %cst_65 [1] : vector<8x128xf32> to vector<8xf32>
      %127 = vector.shape_cast %126 : vector<8xf32> to vector<8x1xf32>
      %128 = math.log %127 : vector<8x1xf32>
      %129 = vector.broadcast %128 : vector<8x1xf32> to vector<8x128xf32>
      %130 = arith.subf %124, %129 : vector<8x128xf32>
      %c0_66 = arith.constant 0 : index
      %c0_67 = arith.constant 0 : index
      %c0_68 = arith.constant 0 : index
      %131 = vector.load %arg18[%c0_66, %c0_67, %c0_68] : memref<1x8x128xf32, #tpu.memory_space<vmem>>, vector<1x8x128xf32>
      %132 = vector.shape_cast %131 : vector<1x8x128xf32> to vector<8x128xf32>
      %133 = vector.shape_cast %130 : vector<8x128xf32> to vector<1x8x128xf32>
      tpu.vector_store %arg18[%c0_66, %c0_67, %c0_68], %133 {strides = array<i32>} : memref<1x8x128xf32, #tpu.memory_space<vmem>>, vector<1x8x128xf32>,
      %c0_69 = arith.constant 0 : index
      %c0_70 = arith.constant 0 : index
      %134 = vector.load %arg19[%c0_69, %c0_70] : memref<8x32xf32, #tpu.memory_space<vmem>>, vector<8x32xf32>
      tpu.vector_store %arg19[%c0_69, %c0_70], %51 {strides = array<i32>} : memref<8x32xf32, #tpu.memory_space<vmem>>, vector<8x32xf32>,
      %c0_71 = arith.constant 0 : index
      %c0_72 = arith.constant 0 : index
      %135 = vector.load %arg20[%c0_71, %c0_72] : memref<8x32xf32, #tpu.memory_space<vmem>>, vector<8x32xf32>
      tpu.vector_store %arg20[%c0_71, %c0_72], %49 {strides = array<i32>} : memref<8x32xf32, #tpu.memory_space<vmem>>, vector<8x32xf32>,
      %c0_73 = arith.constant 0 : index
      %c0_74 = arith.constant 0 : index
      %136 = vector.load %arg21[%c0_73, %c0_74] : memref<8x32xf32, #tpu.memory_space<vmem>>, vector<8x32xf32>
      tpu.vector_store %arg21[%c0_73, %c0_74], %115 {strides = array<i32>} : memref<8x32xf32, #tpu.memory_space<vmem>>, vector<8x32xf32>,
      %c0_75 = arith.constant 0 : index
      %c0_76 = arith.constant 0 : index
      %137 = vector.load %arg22[%c0_75, %c0_76] : memref<8x32xf32, #tpu.memory_space<vmem>>, vector<8x32xf32>
      tpu.vector_store %arg22[%c0_75, %c0_76], %113 {strides = array<i32>} : memref<8x32xf32, #tpu.memory_space<vmem>>, vector<8x32xf32>,
    } else {
    }
    return
  }
  func.func @transform_0(%arg0: i32, %arg1: memref<7xi32, #tpu.memory_space<smem>>) -> (i32, i32, i32) {
    %c0_i32 = arith.constant 0 : i32
    %c0_i32_0 = arith.constant 0 : i32
    %c0_i32_1 = arith.constant 0 : i32
    return %arg0, %c0_i32, %c0_i32_0 : i32, i32, i32
  }
  func.func @transform_1(%arg0: i32, %arg1: memref<7xi32, #tpu.memory_space<smem>>) -> (i32, i32) {
    %c0_i32 = arith.constant 0 : i32
    %c0_i32_0 = arith.constant 0 : i32
    %c0_i32_1 = arith.constant 0 : i32
    return %c0_i32, %c0_i32_0 : i32, i32
  }
  func.func @transform_2(%arg0: i32, %arg1: memref<7xi32, #tpu.memory_space<smem>>) -> (i32, i32, i32) {
    %c0_i32 = arith.constant 0 : i32
    %c0_i32_0 = arith.constant 0 : i32
    %c0_i32_1 = arith.constant 0 : i32
    %c0_i32_2 = arith.constant 0 : i32
    return %c0_i32, %c0_i32_0, %c0_i32_1 : i32, i32, i32
  }
  func.func @transform_3(%arg0: i32, %arg1: memref<7xi32, #tpu.memory_space<smem>>) -> (i32, i32, i32) {
    %c0_i32 = arith.constant 0 : i32
    %c0_i32_0 = arith.constant 0 : i32
    %c0_i32_1 = arith.constant 0 : i32
    %c0_i32_2 = arith.constant 0 : i32
    return %c0_i32, %c0_i32_0, %c0_i32_1 : i32, i32, i32
  }
  func.func @transform_4(%arg0: i32, %arg1: memref<7xi32, #tpu.memory_space<smem>>) -> (i32, i32) {
    %c0_i32 = arith.constant 0 : i32
    %c0_i32_0 = arith.constant 0 : i32
    %c0_i32_1 = arith.constant 0 : i32
    return %c0_i32, %c0_i32_0 : i32, i32
  }
  func.func @transform_5(%arg0: i32, %arg1: memref<7xi32, #tpu.memory_space<smem>>) -> (i32, i32) {
    %c0_i32 = arith.constant 0 : i32
    %c0_i32_0 = arith.constant 0 : i32
    %c0_i32_1 = arith.constant 0 : i32
    return %c0_i32, %c0_i32_0 : i32, i32
  }
  func.func @transform_6(%arg0: i32, %arg1: memref<7xi32, #tpu.memory_space<smem>>) -> (i32, i32) {
    %c0_i32 = arith.constant 0 : i32
    %c0_i32_0 = arith.constant 0 : i32
    %c0_i32_1 = arith.constant 0 : i32
    return %c0_i32, %c0_i32_0 : i32, i32
  }
  func.func @transform_7(%arg0: i32, %arg1: memref<7xi32, #tpu.memory_space<smem>>) -> (i32, i32) {
    %c0_i32 = arith.constant 0 : i32
    %c0_i32_0 = arith.constant 0 : i32
    %c0_i32_1 = arith.constant 0 : i32
    return %c0_i32, %c0_i32_0 : i32, i32
  }
  func.func @transform_8(%arg0: i32, %arg1: memref<7xi32, #tpu.memory_space<smem>>) -> (i32, i32) {
    %c0_i32 = arith.constant 0 : i32
    %c0_i32_0 = arith.constant 0 : i32
    %c0_i32_1 = arith.constant 0 : i32
    return %c0_i32, %c0_i32_0 : i32, i32
  }
  func.func @transform_9(%arg0: i32, %arg1: memref<7xi32, #tpu.memory_space<smem>>) -> (i32, i32) {
    %c0_i32 = arith.constant 0 : i32
    %c0_i32_0 = arith.constant 0 : i32
    %c0_i32_1 = arith.constant 0 : i32
    return %c0_i32, %c0_i32_0 : i32, i32
  }
  func.func @transform_10(%arg0: i32, %arg1: memref<7xi32, #tpu.memory_space<smem>>) -> (i32, i32) {
    %c0_i32 = arith.constant 0 : i32
    %c0_i32_0 = arith.constant 0 : i32
    %c0_i32_1 = arith.constant 0 : i32
    return %c0_i32, %c0_i32_0 : i32, i32
  }
  func.func @transform_11(%arg0: i32, %arg1: memref<7xi32, #tpu.memory_space<smem>>) -> (i32, i32) {
    %c0_i32 = arith.constant 0 : i32
    %c0_i32_0 = arith.constant 0 : i32
    %c0_i32_1 = arith.constant 0 : i32
    return %c0_i32, %c0_i32_0 : i32, i32
  }
  func.func @transform_12(%arg0: i32, %arg1: memref<7xi32, #tpu.memory_space<smem>>) -> (i32, i32) {
    %c0_i32 = arith.constant 0 : i32
    %c0_i32_0 = arith.constant 0 : i32
    %c0_i32_1 = arith.constant 0 : i32
    return %c0_i32, %c0_i32_0 : i32, i32
  }
  func.func @transform_13(%arg0: i32, %arg1: memref<7xi32, #tpu.memory_space<smem>>) -> (i32, i32, i32) {
    %c0_i32 = arith.constant 0 : i32
    %c0_i32_0 = arith.constant 0 : i32
    %c0_i32_1 = arith.constant 0 : i32
    %c0_i32_2 = arith.constant 0 : i32
    return %c0_i32, %c0_i32_0, %c0_i32_1 : i32, i32, i32
  }
  func.func @transform_14(%arg0: i32, %arg1: memref<7xi32, #tpu.memory_space<smem>>) -> (i32, i32) {
    %c0_i32 = arith.constant 0 : i32
    %c0_i32_0 = arith.constant 0 : i32
    %c0_i32_1 = arith.constant 0 : i32
    return %c0_i32, %c0_i32_0 : i32, i32
  }
  func.func @transform_15(%arg0: i32, %arg1: memref<7xi32, #tpu.memory_space<smem>>) -> (i32, i32) {
    %c0_i32 = arith.constant 0 : i32
    %c0_i32_0 = arith.constant 0 : i32
    %c0_i32_1 = arith.constant 0 : i32
    return %c0_i32, %c0_i32_0 : i32, i32
  }
  func.func @transform_16(%arg0: i32, %arg1: memref<7xi32, #tpu.memory_space<smem>>) -> (i32, i32, i32) {
    %c0_i32 = arith.constant 0 : i32
    %c0_i32_0 = arith.constant 0 : i32
    %c0_i32_1 = arith.constant 0 : i32
    return %arg0, %c0_i32, %c0_i32_0 : i32, i32, i32
  }
}

</mosaic_0001>

<llo_original>
// kernel: _lsff_forward_impl.2
$region0: #{_lsff_forward_impl.2}
  #allocation0 [shape = 'u32[]', space=smem, size = 0x4, offset = 0x4, fixed_abs, tag = 'smem constant byte address 0x4 - core index']
  #allocation1 [shape = 'u32[72,128]{1,0:T(1,128)}', space=vmem, size = 0x9000, scoped, tag = 'internal scratch']
  %s0 = inlined_call_operand.vmem [shape: f32[8,24], index: 0, kind: input, shape index: {}]
  %s1 = inlined_call_operand.vmem [shape: f32[48,20], index: 1, kind: input, shape index: {}]
  %s2 = inlined_call_operand.vmem [shape: f32[48,24], index: 2, kind: input, shape index: {}]
  %s3 = inlined_call_operand.vmem [shape: f32[24,32], index: 3, kind: input, shape index: {}]
  %s4 = inlined_call_operand.vmem [shape: f32[1,32], index: 4, kind: input, shape index: {}]
  %s5 = inlined_call_operand.vmem [shape: f32[20,32], index: 5, kind: input, shape index: {}]
  %s6 = inlined_call_operand.vmem [shape: f32[1,32], index: 6, kind: input, shape index: {}]
  %s7 = inlined_call_operand.vmem [shape: f32[24,32], index: 7, kind: input, shape index: {}]
  %s8 = inlined_call_operand.vmem [shape: f32[1,32], index: 8, kind: input, shape index: {}]
  %s9 = inlined_call_operand.vmem [shape: f32[32,32], index: 9, kind: input, shape index: {}]
  %s10 = inlined_call_operand.vmem [shape: f32[32,32], index: 10, kind: input, shape index: {}]
  %s11 = inlined_call_operand.vmem [shape: f32[1,32], index: 11, kind: input, shape index: {}]
  %s12 = inlined_call_operand.vmem [shape: f32[32,16], index: 12, kind: input, shape index: {}]
  %s13 = inlined_call_operand.vmem [shape: f32[1,16], index: 13, kind: input, shape index: {}]
  %s14 = inlined_call_operand.vmem [shape: f32[32,128], index: 14, kind: input, shape index: {}]
  %s15 = inlined_call_operand.vmem [shape: f32[1,128], index: 15, kind: input, shape index: {}]
  %s16 = inlined_call_operand.vmem [shape: f32[8,128], index: 16, kind: output, shape index: {0}]
  %s17 = inlined_call_operand.vmem [shape: f32[48,32], index: 17, kind: output, shape index: {1}]
  %s18 = inlined_call_operand.vmem [shape: f32[48,16], index: 18, kind: output, shape index: {2}]
  %19 = xla_tuple %s16, %s17, %s18
  %s20 = sld [smem:[#allocation0]]
  $region90: #{_lsff_forward_impl.2} parent=0
    _
  %s22 = ssub.s32 1, %s20
  %s23 = scalar_select 0, %s22, %s20
  // Predicated region
  $region2: #{_lsff_forward_impl.2} parent=0 // pred_check
    _
  $region3: #{_lsff_forward_impl.2} parent=0 // pred_check_branch
    %25 = sbr.rel (0) target = $region5
  $region4: #{_lsff_forward_impl.2} parent=0 // pred_region
    _
  $region5: #{_lsff_forward_impl.2} parent=0 // pred_fallthru
    _
  // Predicated region
  $region6: #{_lsff_forward_impl.2} parent=0 // pred_check
    _
  $region7: #{_lsff_forward_impl.2} parent=0 // pred_check_branch
    %27 = sbr.rel (0) target = $region9
  $region8: #{_lsff_forward_impl.2} parent=0 // pred_region
    _
  $region9: #{_lsff_forward_impl.2} parent=0 // pred_fallthru
    _
  // Predicated region
  $region10: #{_lsff_forward_impl.2} parent=0 // pred_check
    _
  $region11: #{_lsff_forward_impl.2} parent=0 // pred_check_branch
    %29 = sbr.rel (0) target = $region13
  $region12: #{_lsff_forward_impl.2} parent=0 // pred_region
    _
  $region13: #{_lsff_forward_impl.2} parent=0 // pred_fallthru
    _
  // Predicated region
  $region14: #{_lsff_forward_impl.2} parent=0 // pred_check
    _
  $region15: #{_lsff_forward_impl.2} parent=0 // pred_check_branch
    %31 = sbr.rel (0) target = $region17
  $region16: #{_lsff_forward_impl.2} parent=0 // pred_region
    _
  $region17: #{_lsff_forward_impl.2} parent=0 // pred_fallthru
    _
  // Predicated region
  $region18: #{_lsff_forward_impl.2} parent=0 // pred_check
    _
  $region19: #{_lsff_forward_impl.2} parent=0 // pred_check_branch
    %33 = sbr.rel (0) target = $region21
  $region20: #{_lsff_forward_impl.2} parent=0 // pred_region
    _
  $region21: #{_lsff_forward_impl.2} parent=0 // pred_fallthru
    _
  // Predicated region
  $region22: #{_lsff_forward_impl.2} parent=0 // pred_check
    _
  $region23: #{_lsff_forward_impl.2} parent=0 // pred_check_branch
    %35 = sbr.rel (0) target = $region25
  $region24: #{_lsff_forward_impl.2} parent=0 // pred_region
    _
  $region25: #{_lsff_forward_impl.2} parent=0 // pred_fallthru
    _
  // Predicated region
  $region26: #{_lsff_forward_impl.2} parent=0 // pred_check
    _
  $region27: #{_lsff_forward_impl.2} parent=0 // pred_check_branch
    %37 = sbr.rel (0) target = $region29
  $region28: #{_lsff_forward_impl.2} parent=0 // pred_region
    _
  $region29: #{_lsff_forward_impl.2} parent=0 // pred_fallthru
    _
  // Predicated region
  $region30: #{_lsff_forward_impl.2} parent=0 // pred_check
    _
  $region31: #{_lsff_forward_impl.2} parent=0 // pred_check_branch
    %39 = sbr.rel (0) target = $region33
  $region32: #{_lsff_forward_impl.2} parent=0 // pred_region
    _
  $region33: #{_lsff_forward_impl.2} parent=0 // pred_fallthru
    _
  // Predicated region
  $region34: #{_lsff_forward_impl.2} parent=0 // pred_check
    _
  $region35: #{_lsff_forward_impl.2} parent=0 // pred_check_branch
    %41 = sbr.rel (0) target = $region37
  $region36: #{_lsff_forward_impl.2} parent=0 // pred_region
    _
  $region37: #{_lsff_forward_impl.2} parent=0 // pred_fallthru
    _
  // Predicated region
  $region38: #{_lsff_forward_impl.2} parent=0 // pred_check
    _
  $region39: #{_lsff_forward_impl.2} parent=0 // pred_check_branch
    %43 = sbr.rel (0) target = $region41
  $region40: #{_lsff_forward_impl.2} parent=0 // pred_region
    _
  $region41: #{_lsff_forward_impl.2} parent=0 // pred_fallthru
    _
  // Predicated region
  $region42: #{_lsff_forward_impl.2} parent=0 // pred_check
    _
  $region43: #{_lsff_forward_impl.2} parent=0 // pred_check_branch
    %45 = sbr.rel (0) target = $region45
  $region44: #{_lsff_forward_impl.2} parent=0 // pred_region
    _
  $region45: #{_lsff_forward_impl.2} parent=0 // pred_fallthru
    _
  // Predicated region
  $region46: #{_lsff_forward_impl.2} parent=0 // pred_check
    _
  $region47: #{_lsff_forward_impl.2} parent=0 // pred_check_branch
    %47 = sbr.rel (0) target = $region49
  $region48: #{_lsff_forward_impl.2} parent=0 // pred_region
    _
  $region49: #{_lsff_forward_impl.2} parent=0 // pred_fallthru
    _
  // Predicated region
  $region50: #{_lsff_forward_impl.2} parent=0 // pred_check
    _
  $region51: #{_lsff_forward_impl.2} parent=0 // pred_check_branch
    %49 = sbr.rel (0) target = $region53
  $region52: #{_lsff_forward_impl.2} parent=0 // pred_region
    _
  $region53: #{_lsff_forward_impl.2} parent=0 // pred_fallthru
    _
  // Predicated region
  $region54: #{_lsff_forward_impl.2} parent=0 // pred_check
    _
  $region55: #{_lsff_forward_impl.2} parent=0 // pred_check_branch
    %51 = sbr.rel (0) target = $region57
  $region56: #{_lsff_forward_impl.2} parent=0 // pred_region
    _
  $region57: #{_lsff_forward_impl.2} parent=0 // pred_fallthru
    _
  // Predicated region
  $region58: #{_lsff_forward_impl.2} parent=0 // pred_check
    _
  $region59: #{_lsff_forward_impl.2} parent=0 // pred_check_branch
    %53 = sbr.rel (0) target = $region61
  $region60: #{_lsff_forward_impl.2} parent=0 // pred_region
    _
  $region61: #{_lsff_forward_impl.2} parent=0 // pred_fallthru
    _
  // Predicated region
  $region62: #{_lsff_forward_impl.2} parent=0 // pred_check
    _
  $region63: #{_lsff_forward_impl.2} parent=0 // pred_check_branch
    %55 = sbr.rel (0) target = $region65
  $region64: #{_lsff_forward_impl.2} parent=0 // pred_region
    _
  $region65: #{_lsff_forward_impl.2} parent=0 // pred_fallthru
    _
  %v56 = vld [vmem:[%s0] sm:$0xff]
  %v57 = vld [vmem:[%s3] sm:$0xff]
  %v58 = vld [vmem:[%s3 + $0x8] sm:$0xff]
  %v59 = vld [vmem:[%s3 + $0x10] sm:$0xff]
  %v60 = vld [vmem:[%s4] sm:$0x1]
  %v62 = vperm.slane %v60, 0
  %vm64 = vcmask 195584
  %v66 = vsel %vm64, %v56, 0
  %68 = vmatpush.msra.mxu0 0.0
  %69 = vmatpush.msra.mxu0 0.0
  %70 = vmatpush.msra.mxu0 0.0
  %71 = vmatpush.msra.mxu0 0.0
  %72 = vmatpush.msra.mxu0 0.0
  %73 = vmatpush.msra.mxu0 0.0
  %74 = vmatpush.msra.mxu0 0.0
  %75 = vmatpush.msra.mxu0 0.0
  %76 = vmatpush.msra.mxu0 0.0
  %77 = vmatpush.msra.mxu0 0.0
  %78 = vmatpush.msra.mxu0 0.0
  %79 = vmatpush.msra.mxu0 0.0
  %80 = vmatpush.msra.mxu0 0.0
  %81 = vmatpush.msra.mxu0 %v59
  %82 = vmatpush.msra.mxu0 %v58
  %83 = vmatpush.msra.mxu0 %v57
  %84 = vmatmul.f32.gmra.mxu0 %v66
  %v85 = vpop.f32.mrf.mxu0
  %v86 = vadd.f32 %v62, %v85
  %87 = vdwg.mxu0
  %v88 = vmax.f32 %v86, 0.0
  %v89 = vld [vmem:[%s14] sm:$0xff]
  %v90 = vld [vmem:[%s14 + $0x8] sm:$0xff]
  %v91 = vld [vmem:[%s14 + $0x10] sm:$0xff]
  %v92 = vld [vmem:[%s14 + $0x18] sm:$0xff]
  %v93 = vld [vmem:[%s15] sm:$0x1]
  %v95 = vperm.slane %v93, 0
  %vm97 = vcmask 261120
  %v99 = vsel %vm97, %v88, 0
  %101 = vmatpush.msra.mxu0 0.0
  %102 = vmatpush.msra.mxu0 0.0
  %103 = vmatpush.msra.mxu0 0.0
  %104 = vmatpush.msra.mxu0 0.0
  %105 = vmatpush.msra.mxu0 0.0
  %106 = vmatpush.msra.mxu0 0.0
  %107 = vmatpush.msra.mxu0 0.0
  %108 = vmatpush.msra.mxu0 0.0
  %109 = vmatpush.msra.mxu0 0.0
  %110 = vmatpush.msra.mxu0 0.0
  %111 = vmatpush.msra.mxu0 0.0
  %112 = vmatpush.msra.mxu0 0.0
  %113 = vmatpush.msra.mxu0 %v92
  %114 = vmatpush.msra.mxu0 %v91
  %115 = vmatpush.msra.mxu0 %v90
  %116 = vmatpush.msra.mxu0 %v89
  %117 = vmatmul.f32.gmra.mxu0 %v99
  %v118 = vpop.f32.mrf.mxu0
  %v119 = vadd.f32 %v95, %v118
  %120 = vdwg.mxu0
  %121 = vst [vmem:[%s16] sm:$0xff] %v119
  %v122 = vld [vmem:[%s1] sm:$0xff]
  %v123 = vld [vmem:[%s1 + $0x8] sm:$0xff]
  %v124 = vld [vmem:[%s1 + $0x10] sm:$0xff]
  %v125 = vld [vmem:[%s1 + $0x18] sm:$0xff]
  %v126 = vld [vmem:[%s1 + $0x20] sm:$0xff]
  %v127 = vld [vmem:[%s1 + $0x28] sm:$0xff]
  %v128 = vld [vmem:[%s5] sm:$0xff]
  %v129 = vld [vmem:[%s5 + $0x8] sm:$0xff]
  %v130 = vld [vmem:[%s5 + $0x10] sm:$0xf]
  %v131 = vld [vmem:[%s6] sm:$0x1]
  %v133 = vperm.slane %v131, 0
  %vm135 = vcmask 162816
  %v137 = vsel %vm135, %v122, 0
  %v140 = vsel %vm135, %v123, 0
  %v143 = vsel %vm135, %v124, 0
  %v146 = vsel %vm135, %v125, 0
  %v149 = vsel %vm135, %v126, 0
  %v152 = vsel %vm135, %v127, 0
  %vm154 = vcmask 1043456
  %v156 = vsel %vm154, %v130, 0
  %158 = vmatpush.msra.mxu0 0.0
  %159 = vmatpush.msra.mxu0 0.0
  %160 = vmatpush.msra.mxu0 0.0
  %161 = vmatpush.msra.mxu0 0.0
  %162 = vmatpush.msra.mxu0 0.0
  %163 = vmatpush.msra.mxu0 0.0
  %164 = vmatpush.msra.mxu0 0.0
  %165 = vmatpush.msra.mxu0 0.0
  %166 = vmatpush.msra.mxu0 0.0
  %167 = vmatpush.msra.mxu0 0.0
  %168 = vmatpush.msra.mxu0 0.0
  %169 = vmatpush.msra.mxu0 0.0
  %170 = vmatpush.msra.mxu0 0.0
  %171 = vmatpush.msra.mxu0 %v156
  %172 = vmatpush.msra.mxu0 %v129
  %173 = vmatpush.msra.mxu0 %v128
  %174 = vmatmul.f32.gmra.mxu0 %v137
  %v175 = vpop.f32.mrf.mxu0
  %v176 = vadd.f32 %v133, %v175
  %177 = vmatmul.f32.gmra.mxu0 %v140
  %v178 = vpop.f32.mrf.mxu0
  %v179 = vadd.f32 %v133, %v178
  %180 = vmatmul.f32.gmra.mxu0 %v143
  %v181 = vpop.f32.mrf.mxu0
  %v182 = vadd.f32 %v133, %v181
  %183 = vmatmul.f32.gmra.mxu0 %v146
  %v184 = vpop.f32.mrf.mxu0
  %v185 = vadd.f32 %v133, %v184
  %186 = vmatmul.f32.gmra.mxu0 %v149
  %v187 = vpop.f32.mrf.mxu0
  %v188 = vadd.f32 %v133, %v187
  %189 = vmatmul.f32.gmra.mxu0 %v152
  %v190 = vpop.f32.mrf.mxu0
  %v191 = vadd.f32 %v133, %v190
  %192 = vdwg.mxu0
  %v193 = vmax.f32 %v176, 0.0
  %v194 = vmax.f32 %v179, 0.0
  %v195 = vmax.f32 %v182, 0.0
  %v196 = vmax.f32 %v185, 0.0
  %v197 = vmax.f32 %v188, 0.0
  %v198 = vmax.f32 %v191, 0.0
  %v199 = vld [vmem:[%s2] sm:$0xff]
  %v200 = vld [vmem:[%s2 + $0x8] sm:$0xff]
  %v201 = vld [vmem:[%s2 + $0x10] sm:$0xff]
  %v202 = vld [vmem:[%s2 + $0x18] sm:$0xff]
  %v203 = vld [vmem:[%s2 + $0x20] sm:$0xff]
  %v204 = vld [vmem:[%s2 + $0x28] sm:$0xff]
  %v205 = vld [vmem:[%s7] sm:$0xff]
  %v206 = vld [vmem:[%s7 + $0x8] sm:$0xff]
  %v207 = vld [vmem:[%s7 + $0x10] sm:$0xff]
  %v208 = vld [vmem:[%s8] sm:$0x1]
  %v210 = vperm.slane %v208, 0
  %v213 = vsel %vm64, %v199, 0
  %v216 = vsel %vm64, %v200, 0
  %v219 = vsel %vm64, %v201, 0
  %v222 = vsel %vm64, %v202, 0
  %v225 = vsel %vm64, %v203, 0
  %v228 = vsel %vm64, %v204, 0
  %230 = vmatpush.msra.mxu0 0.0
  %231 = vmatpush.msra.mxu0 0.0
  %232 = vmatpush.msra.mxu0 0.0
  %233 = vmatpush.msra.mxu0 0.0
  %234 = vmatpush.msra.mxu0 0.0
  %235 = vmatpush.msra.mxu0 0.0
  %236 = vmatpush.msra.mxu0 0.0
  %237 = vmatpush.msra.mxu0 0.0
  %238 = vmatpush.msra.mxu0 0.0
  %239 = vmatpush.msra.mxu0 0.0
  %240 = vmatpush.msra.mxu0 0.0
  %241 = vmatpush.msra.mxu0 0.0
  %242 = vmatpush.msra.mxu0 0.0
  %243 = vmatpush.msra.mxu0 %v207
  %244 = vmatpush.msra.mxu0 %v206
  %245 = vmatpush.msra.mxu0 %v205
  %246 = vmatmul.f32.gmra.mxu0 %v213
  %v247 = vpop.f32.mrf.mxu0
  %v248 = vadd.f32 %v210, %v247
  %249 = vmatmul.f32.gmra.mxu0 %v216
  %v250 = vpop.f32.mrf.mxu0
  %v251 = vadd.f32 %v210, %v250
  %252 = vmatmul.f32.gmra.mxu0 %v219
  %v253 = vpop.f32.mrf.mxu0
  %v254 = vadd.f32 %v210, %v253
  %255 = vmatmul.f32.gmra.mxu0 %v222
  %v256 = vpop.f32.mrf.mxu0
  %v257 = vadd.f32 %v210, %v256
  %258 = vmatmul.f32.gmra.mxu0 %v225
  %v259 = vpop.f32.mrf.mxu0
  %v260 = vadd.f32 %v210, %v259
  %261 = vmatmul.f32.gmra.mxu0 %v228
  %v262 = vpop.f32.mrf.mxu0
  %v263 = vadd.f32 %v210, %v262
  %264 = vdwg.mxu0
  %v265 = vmax.f32 %v248, 0.0
  %v266 = vmax.f32 %v251, 0.0
  %v267 = vmax.f32 %v254, 0.0
  %v268 = vmax.f32 %v257, 0.0
  %v269 = vmax.f32 %v260, 0.0
  %v270 = vmax.f32 %v263, 0.0
  %v271 = vld [vmem:[%s9] sm:$0xff]
  %v272 = vld [vmem:[%s9 + $0x8] sm:$0xff]
  %v273 = vld [vmem:[%s9 + $0x10] sm:$0xff]
  %v274 = vld [vmem:[%s9 + $0x18] sm:$0xff]
  %v275 = vld [vmem:[%s10] sm:$0xff]
  %v276 = vld [vmem:[%s10 + $0x8] sm:$0xff]
  %v277 = vld [vmem:[%s10 + $0x10] sm:$0xff]
  %v278 = vld [vmem:[%s10 + $0x18] sm:$0xff]
  %v280 = vsel %vm97, %v265, 0
  %v283 = vsel %vm97, %v266, 0
  %v286 = vsel %vm97, %v267, 0
  %v289 = vsel %vm97, %v268, 0
  %v292 = vsel %vm97, %v269, 0
  %v295 = vsel %vm97, %v270, 0
  %297 = vmatpush.msra.mxu0 0.0
  %298 = vmatpush.msra.mxu0 0.0
  %299 = vmatpush.msra.mxu0 0.0
  %300 = vmatpush.msra.mxu0 0.0
  %301 = vmatpush.msra.mxu0 0.0
  %302 = vmatpush.msra.mxu0 0.0
  %303 = vmatpush.msra.mxu0 0.0
  %304 = vmatpush.msra.mxu0 0.0
  %305 = vmatpush.msra.mxu0 0.0
  %306 = vmatpush.msra.mxu0 0.0
  %307 = vmatpush.msra.mxu0 0.0
  %308 = vmatpush.msra.mxu0 0.0
  %309 = vmatpush.msra.mxu0 %v278
  %310 = vmatpush.msra.mxu0 %v277
  %311 = vmatpush.msra.mxu0 %v276
  %312 = vmatpush.msra.mxu0 %v275
  %313 = vmatmul.f32.gmra.mxu0 %v280
  %v314 = vpop.f32.mrf.mxu0
  %v315 = vadd.f32 0.0, %v314
  %316 = vmatmul.f32.gmra.mxu0 %v283
  %v317 = vpop.f32.mrf.mxu0
  %v318 = vadd.f32 0.0, %v317
  %319 = vmatmul.f32.gmra.mxu0 %v286
  %v320 = vpop.f32.mrf.mxu0
  %v321 = vadd.f32 0.0, %v320
  %322 = vmatmul.f32.gmra.mxu0 %v289
  %v323 = vpop.f32.mrf.mxu0
  %v324 = vadd.f32 0.0, %v323
  %325 = vmatmul.f32.gmra.mxu0 %v292
  %v326 = vpop.f32.mrf.mxu0
  %v327 = vadd.f32 0.0, %v326
  %328 = vmatmul.f32.gmra.mxu0 %v295
  %v329 = vpop.f32.mrf.mxu0
  %v330 = vadd.f32 0.0, %v329
  %331 = vdwg.mxu0
  %v333 = vsel %vm97, %v193, 0
  %v336 = vsel %vm97, %v194, 0
  %v339 = vsel %vm97, %v195, 0
  %v342 = vsel %vm97, %v196, 0
  %v345 = vsel %vm97, %v197, 0
  %v348 = vsel %vm97, %v198, 0
  %350 = vmatpush.msra.mxu0 0.0
  %351 = vmatpush.msra.mxu0 0.0
  %352 = vmatpush.msra.mxu0 0.0
  %353 = vmatpush.msra.mxu0 0.0
  %354 = vmatpush.msra.mxu0 0.0
  %355 = vmatpush.msra.mxu0 0.0
  %356 = vmatpush.msra.mxu0 0.0
  %357 = vmatpush.msra.mxu0 0.0
  %358 = vmatpush.msra.mxu0 0.0
  %359 = vmatpush.msra.mxu0 0.0
  %360 = vmatpush.msra.mxu0 0.0
  %361 = vmatpush.msra.mxu0 0.0
  %362 = vmatpush.msra.mxu0 %v274
  %363 = vmatpush.msra.mxu0 %v273
  %364 = vmatpush.msra.mxu0 %v272
  %365 = vmatpush.msra.mxu0 %v271
  %366 = vmatmul.f32.gmra.mxu0 %v333
  %v367 = vpop.f32.mrf.mxu0
  %v368 = vadd.f32 %v315, %v367
  %369 = vmatmul.f32.gmra.mxu0 %v336
  %v370 = vpop.f32.mrf.mxu0
  %v371 = vadd.f32 %v318, %v370
  %372 = vmatmul.f32.gmra.mxu0 %v339
  %v373 = vpop.f32.mrf.mxu0
  %v374 = vadd.f32 %v321, %v373
  %375 = vmatmul.f32.gmra.mxu0 %v342
  %v376 = vpop.f32.mrf.mxu0
  %v377 = vadd.f32 %v324, %v376
  %378 = vmatmul.f32.gmra.mxu0 %v345
  %v379 = vpop.f32.mrf.mxu0
  %v380 = vadd.f32 %v327, %v379
  %381 = vmatmul.f32.gmra.mxu0 %v348
  %v382 = vpop.f32.mrf.mxu0
  %v383 = vadd.f32 %v330, %v382
  %384 = vdwg.mxu0
  %v385 = vld [vmem:[%s11] sm:$0x1]
  %v387 = vperm.slane %v385, 0
  %v389 = vadd.f32 %v368, %v387
  %v390 = vadd.f32 %v371, %v387
  %v391 = vadd.f32 %v374, %v387
  %v392 = vadd.f32 %v377, %v387
  %v393 = vadd.f32 %v380, %v387
  %v394 = vadd.f32 %v383, %v387
  %v395 = vmax.f32 %v389, 0.0
  %v396 = vmax.f32 %v390, 0.0
  %v397 = vmax.f32 %v391, 0.0
  %v398 = vmax.f32 %v392, 0.0
  %v399 = vmax.f32 %v393, 0.0
  %v400 = vmax.f32 %v394, 0.0
  %v401 = vadd.f32 %v395, %v265
  %v402 = vadd.f32 %v396, %v266
  %v403 = vadd.f32 %v397, %v267
  %v404 = vadd.f32 %v398, %v268
  %v405 = vadd.f32 %v399, %v269
  %v406 = vadd.f32 %v400, %v270
  %407 = vst.msk [vmem:[%s17] sm:$0xff] %vm97, %v401
  %408 = vst.msk [vmem:[%s17 + $0x8] sm:$0xff] %vm97, %v402
  %409 = vst.msk [vmem:[%s17 + $0x10] sm:$0xff] %vm97, %v403
  %410 = vst.msk [vmem:[%s17 + $0x18] sm:$0xff] %vm97, %v404
  %411 = vst.msk [vmem:[%s17 + $0x20] sm:$0xff] %vm97, %v405
  %412 = vst.msk [vmem:[%s17 + $0x28] sm:$0xff] %vm97, %v406
  %v413 = vld [vmem:[%s12] sm:$0xff]
  %v414 = vld [vmem:[%s12 + $0x8] sm:$0xff]
  %v415 = vld [vmem:[%s12 + $0x10] sm:$0xff]
  %v416 = vld [vmem:[%s12 + $0x18] sm:$0xff]
  %v417 = vld [vmem:[%s13] sm:$0x1]
  %v419 = vperm.slane %v417, 0
  %v422 = vsel %vm97, %v401, 0
  %v425 = vsel %vm97, %v402, 0
  %v428 = vsel %vm97, %v403, 0
  %v431 = vsel %vm97, %v404, 0
  %v434 = vsel %vm97, %v405, 0
  %v437 = vsel %vm97, %v406, 0
  %439 = vmatpush.msra.mxu0 0.0
  %440 = vmatpush.msra.mxu0 0.0
  %441 = vmatpush.msra.mxu0 0.0
  %442 = vmatpush.msra.mxu0 0.0
  %443 = vmatpush.msra.mxu0 0.0
  %444 = vmatpush.msra.mxu0 0.0
  %445 = vmatpush.msra.mxu0 0.0
  %446 = vmatpush.msra.mxu0 0.0
  %447 = vmatpush.msra.mxu0 0.0
  %448 = vmatpush.msra.mxu0 0.0
  %449 = vmatpush.msra.mxu0 0.0
  %450 = vmatpush.msra.mxu0 0.0
  %451 = vmatpush.msra.mxu0 %v416
  %452 = vmatpush.msra.mxu0 %v415
  %453 = vmatpush.msra.mxu0 %v414
  %454 = vmatpush.msra.mxu0 %v413
  %455 = vmatmul.f32.gmra.mxu0 %v422
  %v456 = vpop.f32.mrf.mxu0
  %v457 = vadd.f32 %v419, %v456
  %458 = vmatmul.f32.gmra.mxu0 %v425
  %v459 = vpop.f32.mrf.mxu0
  %v460 = vadd.f32 %v419, %v459
  %461 = vmatmul.f32.gmra.mxu0 %v428
  %v462 = vpop.f32.mrf.mxu0
  %v463 = vadd.f32 %v419, %v462
  %464 = vmatmul.f32.gmra.mxu0 %v431
  %v465 = vpop.f32.mrf.mxu0
  %v466 = vadd.f32 %v419, %v465
  %467 = vmatmul.f32.gmra.mxu0 %v434
  %v468 = vpop.f32.mrf.mxu0
  %v469 = vadd.f32 %v419, %v468
  %470 = vmatmul.f32.gmra.mxu0 %v437
  %v471 = vpop.f32.mrf.mxu0
  %v472 = vadd.f32 %v419, %v471
  %473 = vdwg.mxu0
  %vm474 = vcmask 130048
  %475 = vst.msk [vmem:[%s18] sm:$0xff] %vm474, %v457
  %476 = vst.msk [vmem:[%s18 + $0x8] sm:$0xff] %vm474, %v460
  %477 = vst.msk [vmem:[%s18 + $0x10] sm:$0xff] %vm474, %v463
  %478 = vst.msk [vmem:[%s18 + $0x18] sm:$0xff] %vm474, %v466
  %479 = vst.msk [vmem:[%s18 + $0x20] sm:$0xff] %vm474, %v469
  %480 = vst.msk [vmem:[%s18 + $0x28] sm:$0xff] %vm474, %v472
  // Predicated region
  $region66: #{_lsff_forward_impl.2} parent=0 // pred_check
    _
  $region67: #{_lsff_forward_impl.2} parent=0 // pred_check_branch
    %482 = sbr.rel (0) target = $region69
  $region68: #{_lsff_forward_impl.2} parent=0 // pred_region
    _
  $region69: #{_lsff_forward_impl.2} parent=0 // pred_fallthru
    _
  // Predicated region
  $region70: #{_lsff_forward_impl.2} parent=0 // pred_check
    _
  $region71: #{_lsff_forward_impl.2} parent=0 // pred_check_branch
    %484 = sbr.rel (0) target = $region73
  $region72: #{_lsff_forward_impl.2} parent=0 // pred_region
    _
  $region73: #{_lsff_forward_impl.2} parent=0 // pred_fallthru
    _
  // Predicated region
  $region74: #{_lsff_forward_impl.2} parent=0 // pred_check
    _
  $region75: #{_lsff_forward_impl.2} parent=0 // pred_check_branch
    %486 = sbr.rel (0) target = $region77
  $region76: #{_lsff_forward_impl.2} parent=0 // pred_region
    _
  $region77: #{_lsff_forward_impl.2} parent=0 // pred_fallthru
    _
  // Predicated region
  $region78: #{_lsff_forward_impl.2} parent=0 // pred_check
    _
  $region79: #{_lsff_forward_impl.2} parent=0 // pred_check_branch
    %488 = sbr.rel (0) target = $region81
  $region80: #{_lsff_forward_impl.2} parent=0 // pred_region
    _
  $region81: #{_lsff_forward_impl.2} parent=0 // pred_fallthru
    _
  // Predicated region
  $region82: #{_lsff_forward_impl.2} parent=0 // pred_check
    _
  $region83: #{_lsff_forward_impl.2} parent=0 // pred_check_branch
    %490 = sbr.rel (0) target = $region85
  $region84: #{_lsff_forward_impl.2} parent=0 // pred_region
    _
  $region85: #{_lsff_forward_impl.2} parent=0 // pred_fallthru
    _
  // Predicated region
  $region86: #{_lsff_forward_impl.2} parent=0 // pred_check
    _
  $region87: #{_lsff_forward_impl.2} parent=0 // pred_check_branch
    %492 = sbr.rel (0) target = $region89
  $region88: #{_lsff_forward_impl.2} parent=0 // pred_region
    _
  $region89: #{_lsff_forward_impl.2} parent=0 // pred_fallthru
    _

// kernel: _lsff_forward_impl.3
$region0: #{_lsff_forward_impl.3}
  #allocation0 [shape = 'u32[]', space=smem, size = 0x4, offset = 0x4, fixed_abs, tag = 'smem constant byte address 0x4 - core index']
  #allocation1 [shape = 'u32[72,128]{1,0:T(1,128)}', space=vmem, size = 0x9000, scoped, tag = 'internal scratch']
  #allocation2 [shape = 'f32[8,32]{1,0:T(8,128)}', space=vmem, size = 0x1000, scoped, tag = 'scratch operand']
  #allocation3 [shape = 'f32[8,32]{1,0:T(8,128)}', space=vmem, size = 0x1000, scoped, tag = 'scratch operand']
  #allocation4 [shape = 'f32[8,32]{1,0:T(8,128)}', space=vmem, size = 0x1000, scoped, tag = 'scratch operand']
  #allocation5 [shape = 'f32[8,32]{1,0:T(8,128)}', space=vmem, size = 0x1000, scoped, tag = 'scratch operand']
  #allocation6 [shape = 's32[1]{0}', space=sflag, size = 0x4, scoped, tag = 'scoped memory for _lsff_forward_impl.3']
  #allocation7 [shape = 'u8[512]{0}', space=smem, size = 0x200, scoped, tag = 'prefetched SMEM operand 0']
  %s0 = inlined_call_operand.vmem [shape: s32[7], index: 0, kind: input, shape index: {}]
  %s1 = inlined_call_operand.vmem [shape: f32[7,8,16], index: 1, kind: input, shape index: {}]
  %s2 = inlined_call_operand.vmem [shape: f32[8,128], index: 2, kind: input, shape index: {}]
  %s3 = inlined_call_operand.vmem [shape: f32[8,6,32], index: 3, kind: input, shape index: {}]
  %s4 = inlined_call_operand.vmem [shape: f32[8,6,16], index: 4, kind: input, shape index: {}]
  %s5 = inlined_call_operand.vmem [shape: f32[32,128], index: 5, kind: input, shape index: {}]
  %s6 = inlined_call_operand.vmem [shape: f32[16,128], index: 6, kind: input, shape index: {}]
  %s7 = inlined_call_operand.vmem [shape: f32[32,128], index: 7, kind: input, shape index: {}]
  %s8 = inlined_call_operand.vmem [shape: f32[32,128], index: 8, kind: input, shape index: {}]
  %s9 = inlined_call_operand.vmem [shape: f32[32,128], index: 9, kind: input, shape index: {}]
  %s10 = inlined_call_operand.vmem [shape: f32[32,128], index: 10, kind: input, shape index: {}]
  %s11 = inlined_call_operand.vmem [shape: f32[1,128], index: 11, kind: input, shape index: {}]
  %s12 = inlined_call_operand.vmem [shape: f32[32,16], index: 12, kind: input, shape index: {}]
  %s13 = inlined_call_operand.vmem [shape: f32[1,16], index: 13, kind: input, shape index: {}]
  %s14 = inlined_call_operand.vmem [shape: f32[1,1,16], index: 14, kind: input, shape index: {}]
  %s15 = inlined_call_operand.vmem [shape: f32[32,128], index: 15, kind: input, shape index: {}]
  %s16 = inlined_call_operand.vmem [shape: f32[1,128], index: 16, kind: input, shape index: {}]
  %s17 = inlined_call_operand.vmem [shape: f32[7,8,128], index: 17, kind: output, shape index: {}]
  %s18 = sld [smem:[#allocation0]]
  $region109: #{_lsff_forward_impl.3} parent=0
    _
  %s20 = ssub.s32 1, %s18
  %s21 = scalar_select 0, %s20, %s18
  %s23 = sshll.u32 %s0, 4
  %s24 = int_to_ptr.vmem [resolvable:$true] %s23
  %26 = dma.vmem_to_smem %s24, 16, [#allocation7], [#allocation6]
  %28 = dma.done [#allocation6], 16
  %29 = sfence
  loop: start=0, step=1, limit=9
  $region2: #{_lsff_forward_impl.3} parent=0 // loop_pre_header
    _
  $region3: #{_lsff_forward_impl.3} parent=0 // loop_header
    %s31 = sphi 0, %s35
    %p32 = scmp.ge.s32.totalorder %s31, 9
    %s41 = sphi 0, %s43
    %s44 = sphi 0, %s41
    %s45 = sphi 0, %s44
    %s61 = sphi 0, %s45
    %s65 = sphi 0, %s65
    %s67 = sphi 0, %s65
    %s68 = sphi 0, %s67
    %s82 = sphi 0, %s68
    %s86 = sphi 0, %s86
    %s88 = sphi 0, %s86
    %s89 = sphi 0, %s88
    %s103 = sphi 0, %s89
    %s107 = sphi 0, %s107
    %s109 = sphi 0, %s107
    %s110 = sphi 0, %s109
    %s124 = sphi 0, %s110
    %s128 = sphi 0, %s128
    %s130 = sphi 0, %s128
    %s131 = sphi 0, %s130
    %s145 = sphi 0, %s131
    %s149 = sphi 0, %s149
    %s151 = sphi 0, %s149
    %s152 = sphi 0, %s151
    %s166 = sphi 0, %s152
    %s170 = sphi 0, %s170
    %s172 = sphi 0, %s170
    %s173 = sphi 0, %s172
    %s187 = sphi 0, %s173
    %s191 = sphi 0, %s191
    %s193 = sphi 0, %s191
    %s194 = sphi 0, %s193
    %s208 = sphi 0, %s194
    %s212 = sphi 0, %s212
    %s214 = sphi 0, %s212
    %s215 = sphi 0, %s214
    %s229 = sphi 0, %s215
    %s233 = sphi 0, %s233
    %s235 = sphi 0, %s233
    %s236 = sphi 0, %s235
    %s250 = sphi 0, %s236
    %s254 = sphi 0, %s254
    %s256 = sphi 0, %s254
    %s257 = sphi 0, %s256
    %s271 = sphi 0, %s257
    %s275 = sphi 0, %s275
    %s277 = sphi 0, %s275
    %s278 = sphi 0, %s277
    %s292 = sphi 0, %s278
    %s296 = sphi 0, %s296
    %s298 = sphi 0, %s296
    %s299 = sphi 0, %s298
    %s313 = sphi 0, %s299
    %s317 = sphi 0, %s317
    %s319 = sphi 0, %s317
    %s320 = sphi 0, %s319
    %s334 = sphi 0, %s320
    %s338 = sphi 0, %s338
    %s340 = sphi 0, %s338
    %s341 = sphi 0, %s340
    %s355 = sphi 0, %s341
    %s359 = sphi 0, %s359
    %s361 = sphi 0, %s359
    %s362 = sphi 0, %s361
    %s376 = sphi 0, %s362
    %s382 = sphi 0, %s384
    %s385 = sphi 0, %s382
    %s386 = sphi 0, %s385
    %s402 = sphi 0, %s386
  $region4: #{_lsff_forward_impl.3} parent=0 // loop_header_branch
    %34 = sbr.rel (%p32) target = $region8
  $region5: #{_lsff_forward_impl.3} parent=0 // loop_body
    %s36 = ssub.s32 %s31, 1
    %s37 = ssub.s32 %s31, 2
    %s38 = sadd.s32 %s31, 1
    %s39 = ssub.s32 %s31, %s38
    %p40 = scmp.eq.s32.totalorder %s39, 0
    %s42 = sadd.s32 %s41, 1
    %s43 = scalar_select %p40, %s41, %s42
    %p46 = pneg %p40
    %p47 = scmp.eq.s32.totalorder %s31, 6
    %p48 = por %p46, %p47
    %p49 = scmp.ne.s32.totalorder %s41, %s44
    %p50 = scmp.eq.s32.totalorder %s31, 0
    %p51 = por %p49, %p50
    %p52 = scmp.ne.s32.totalorder %s41, %s44
    %p53 = scmp.eq.s32.totalorder %s36, 6
    %p54 = por %p52, %p53
    %p55 = scmp.ne.s32.totalorder %s44, %s45
    %p56 = scmp.eq.s32.totalorder %s36, 0
    %p57 = por %p55, %p56
    %p58 = scmp.ne.s32.totalorder %s44, %s45
    %p59 = scmp.eq.s32.totalorder %s37, 6
    %p60 = por %p58, %p59
    %p62 = scmp.ne.s32.totalorder %s45, %s61
    %p63 = scmp.eq.s32.totalorder %s37, 0
    %p64 = por %p62, %p63
    %s66 = sadd.s32 %s65, 1
    %p69 = scmp.eq.s32.totalorder %s31, 6
    %p70 = scmp.ne.s32.totalorder %s65, %s67
    %p71 = scmp.eq.s32.totalorder %s31, 0
    %p72 = por %p70, %p71
    %p73 = scmp.ne.s32.totalorder %s65, %s67
    %p74 = scmp.eq.s32.totalorder %s36, 6
    %p75 = por %p73, %p74
    %p76 = scmp.ne.s32.totalorder %s67, %s68
    %p77 = scmp.eq.s32.totalorder %s36, 0
    %p78 = por %p76, %p77
    %p79 = scmp.ne.s32.totalorder %s67, %s68
    %p80 = scmp.eq.s32.totalorder %s37, 6
    %p81 = por %p79, %p80
    %p83 = scmp.ne.s32.totalorder %s68, %s82
    %p84 = scmp.eq.s32.totalorder %s37, 0
    %p85 = por %p83, %p84
    %s87 = sadd.s32 %s86, 1
    %p90 = scmp.eq.s32.totalorder %s31, 6
    %p91 = scmp.ne.s32.totalorder %s86, %s88
    %p92 = scmp.eq.s32.totalorder %s31, 0
    %p93 = por %p91, %p92
    %p94 = scmp.ne.s32.totalorder %s86, %s88
    %p95 = scmp.eq.s32.totalorder %s36, 6
    %p96 = por %p94, %p95
    %p97 = scmp.ne.s32.totalorder %s88, %s89
    %p98 = scmp.eq.s32.totalorder %s36, 0
    %p99 = por %p97, %p98
    %p100 = scmp.ne.s32.totalorder %s88, %s89
    %p101 = scmp.eq.s32.totalorder %s37, 6
    %p102 = por %p100, %p101
    %p104 = scmp.ne.s32.totalorder %s89, %s103
    %p105 = scmp.eq.s32.totalorder %s37, 0
    %p106 = por %p104, %p105
    %s108 = sadd.s32 %s107, 1
    %p111 = scmp.eq.s32.totalorder %s31, 6
    %p112 = scmp.ne.s32.totalorder %s107, %s109
    %p113 = scmp.eq.s32.totalorder %s31, 0
    %p114 = por %p112, %p113
    %p115 = scmp.ne.s32.totalorder %s107, %s109
    %p116 = scmp.eq.s32.totalorder %s36, 6
    %p117 = por %p115, %p116
    %p118 = scmp.ne.s32.totalorder %s109, %s110
    %p119 = scmp.eq.s32.totalorder %s36, 0
    %p120 = por %p118, %p119
    %p121 = scmp.ne.s32.totalorder %s109, %s110
    %p122 = scmp.eq.s32.totalorder %s37, 6
    %p123 = por %p121, %p122
    %p125 = scmp.ne.s32.totalorder %s110, %s124
    %p126 = scmp.eq.s32.totalorder %s37, 0
    %p127 = por %p125, %p126
    %s129 = sadd.s32 %s128, 1
    %p132 = scmp.eq.s32.totalorder %s31, 6
    %p133 = scmp.ne.s32.totalorder %s128, %s130
    %p134 = scmp.eq.s32.totalorder %s31, 0
    %p135 = por %p133, %p134
    %p136 = scmp.ne.s32.totalorder %s128, %s130
    %p137 = scmp.eq.s32.totalorder %s36, 6
    %p138 = por %p136, %p137
    %p139 = scmp.ne.s32.totalorder %s130, %s131
    %p140 = scmp.eq.s32.totalorder %s36, 0
    %p141 = por %p139, %p140
    %p142 = scmp.ne.s32.totalorder %s130, %s131
    %p143 = scmp.eq.s32.totalorder %s37, 6
    %p144 = por %p142, %p143
    %p146 = scmp.ne.s32.totalorder %s131, %s145
    %p147 = scmp.eq.s32.totalorder %s37, 0
    %p148 = por %p146, %p147
    %s150 = sadd.s32 %s149, 1
    %p153 = scmp.eq.s32.totalorder %s31, 6
    %p154 = scmp.ne.s32.totalorder %s149, %s151
    %p155 = scmp.eq.s32.totalorder %s31, 0
    %p156 = por %p154, %p155
    %p157 = scmp.ne.s32.totalorder %s149, %s151
    %p158 = scmp.eq.s32.totalorder %s36, 6
    %p159 = por %p157, %p158
    %p160 = scmp.ne.s32.totalorder %s151, %s152
    %p161 = scmp.eq.s32.totalorder %s36, 0
    %p162 = por %p160, %p161
    %p163 = scmp.ne.s32.totalorder %s151, %s152
    %p164 = scmp.eq.s32.totalorder %s37, 6
    %p165 = por %p163, %p164
    %p167 = scmp.ne.s32.totalorder %s152, %s166
    %p168 = scmp.eq.s32.totalorder %s37, 0
    %p169 = por %p167, %p168
    %s171 = sadd.s32 %s170, 1
    %p174 = scmp.eq.s32.totalorder %s31, 6
    %p175 = scmp.ne.s32.totalorder %s170, %s172
    %p176 = scmp.eq.s32.totalorder %s31, 0
    %p177 = por %p175, %p176
    %p178 = scmp.ne.s32.totalorder %s170, %s172
    %p179 = scmp.eq.s32.totalorder %s36, 6
    %p180 = por %p178, %p179
    %p181 = scmp.ne.s32.totalorder %s172, %s173
    %p182 = scmp.eq.s32.totalorder %s36, 0
    %p183 = por %p181, %p182
    %p184 = scmp.ne.s32.totalorder %s172, %s173
    %p185 = scmp.eq.s32.totalorder %s37, 6
    %p186 = por %p184, %p185
    %p188 = scmp.ne.s32.totalorder %s173, %s187
    %p189 = scmp.eq.s32.totalorder %s37, 0
    %p190 = por %p188, %p189
    %s192 = sadd.s32 %s191, 1
    %p195 = scmp.eq.s32.totalorder %s31, 6
    %p196 = scmp.ne.s32.totalorder %s191, %s193
    %p197 = scmp.eq.s32.totalorder %s31, 0
    %p198 = por %p196, %p197
    %p199 = scmp.ne.s32.totalorder %s191, %s193
    %p200 = scmp.eq.s32.totalorder %s36, 6
    %p201 = por %p199, %p200
    %p202 = scmp.ne.s32.totalorder %s193, %s194
    %p203 = scmp.eq.s32.totalorder %s36, 0
    %p204 = por %p202, %p203
    %p205 = scmp.ne.s32.totalorder %s193, %s194
    %p206 = scmp.eq.s32.totalorder %s37, 6
    %p207 = por %p205, %p206
    %p209 = scmp.ne.s32.totalorder %s194, %s208
    %p210 = scmp.eq.s32.totalorder %s37, 0
    %p211 = por %p209, %p210
    %s213 = sadd.s32 %s212, 1
    %p216 = scmp.eq.s32.totalorder %s31, 6
    %p217 = scmp.ne.s32.totalorder %s212, %s214
    %p218 = scmp.eq.s32.totalorder %s31, 0
    %p219 = por %p217, %p218
    %p220 = scmp.ne.s32.totalorder %s212, %s214
    %p221 = scmp.eq.s32.totalorder %s36, 6
    %p222 = por %p220, %p221
    %p223 = scmp.ne.s32.totalorder %s214, %s215
    %p224 = scmp.eq.s32.totalorder %s36, 0
    %p225 = por %p223, %p224
    %p226 = scmp.ne.s32.totalorder %s214, %s215
    %p227 = scmp.eq.s32.totalorder %s37, 6
    %p228 = por %p226, %p227
    %p230 = scmp.ne.s32.totalorder %s215, %s229
    %p231 = scmp.eq.s32.totalorder %s37, 0
    %p232 = por %p230, %p231
    %s234 = sadd.s32 %s233, 1
    %p237 = scmp.eq.s32.totalorder %s31, 6
    %p238 = scmp.ne.s32.totalorder %s233, %s235
    %p239 = scmp.eq.s32.totalorder %s31, 0
    %p240 = por %p238, %p239
    %p241 = scmp.ne.s32.totalorder %s233, %s235
    %p242 = scmp.eq.s32.totalorder %s36, 6
    %p243 = por %p241, %p242
    %p244 = scmp.ne.s32.totalorder %s235, %s236
    %p245 = scmp.eq.s32.totalorder %s36, 0
    %p246 = por %p244, %p245
    %p247 = scmp.ne.s32.totalorder %s235, %s236
    %p248 = scmp.eq.s32.totalorder %s37, 6
    %p249 = por %p247, %p248
    %p251 = scmp.ne.s32.totalorder %s236, %s250
    %p252 = scmp.eq.s32.totalorder %s37, 0
    %p253 = por %p251, %p252
    %s255 = sadd.s32 %s254, 1
    %p258 = scmp.eq.s32.totalorder %s31, 6
    %p259 = scmp.ne.s32.totalorder %s254, %s256
    %p260 = scmp.eq.s32.totalorder %s31, 0
    %p261 = por %p259, %p260
    %p262 = scmp.ne.s32.totalorder %s254, %s256
    %p263 = scmp.eq.s32.totalorder %s36, 6
    %p264 = por %p262, %p263
    %p265 = scmp.ne.s32.totalorder %s256, %s257
    %p266 = scmp.eq.s32.totalorder %s36, 0
    %p267 = por %p265, %p266
    %p268 = scmp.ne.s32.totalorder %s256, %s257
    %p269 = scmp.eq.s32.totalorder %s37, 6
    %p270 = por %p268, %p269
    %p272 = scmp.ne.s32.totalorder %s257, %s271
    %p273 = scmp.eq.s32.totalorder %s37, 0
    %p274 = por %p272, %p273
    %s276 = sadd.s32 %s275, 1
    %p279 = scmp.eq.s32.totalorder %s31, 6
    %p280 = scmp.ne.s32.totalorder %s275, %s277
    %p281 = scmp.eq.s32.totalorder %s31, 0
    %p282 = por %p280, %p281
    %p283 = scmp.ne.s32.totalorder %s275, %s277
    %p284 = scmp.eq.s32.totalorder %s36, 6
    %p285 = por %p283, %p284
    %p286 = scmp.ne.s32.totalorder %s277, %s278
    %p287 = scmp.eq.s32.totalorder %s36, 0
    %p288 = por %p286, %p287
    %p289 = scmp.ne.s32.totalorder %s277, %s278
    %p290 = scmp.eq.s32.totalorder %s37, 6
    %p291 = por %p289, %p290
    %p293 = scmp.ne.s32.totalorder %s278, %s292
    %p294 = scmp.eq.s32.totalorder %s37, 0
    %p295 = por %p293, %p294
    %s297 = sadd.s32 %s296, 1
    %p300 = scmp.eq.s32.totalorder %s31, 6
    %p301 = scmp.ne.s32.totalorder %s296, %s298
    %p302 = scmp.eq.s32.totalorder %s31, 0
    %p303 = por %p301, %p302
    %p304 = scmp.ne.s32.totalorder %s296, %s298
    %p305 = scmp.eq.s32.totalorder %s36, 6
    %p306 = por %p304, %p305
    %p307 = scmp.ne.s32.totalorder %s298, %s299
    %p308 = scmp.eq.s32.totalorder %s36, 0
    %p309 = por %p307, %p308
    %p310 = scmp.ne.s32.totalorder %s298, %s299
    %p311 = scmp.eq.s32.totalorder %s37, 6
    %p312 = por %p310, %p311
    %p314 = scmp.ne.s32.totalorder %s299, %s313
    %p315 = scmp.eq.s32.totalorder %s37, 0
    %p316 = por %p314, %p315
    %s318 = sadd.s32 %s317, 1
    %p321 = scmp.eq.s32.totalorder %s31, 6
    %p322 = scmp.ne.s32.totalorder %s317, %s319
    %p323 = scmp.eq.s32.totalorder %s31, 0
    %p324 = por %p322, %p323
    %p325 = scmp.ne.s32.totalorder %s317, %s319
    %p326 = scmp.eq.s32.totalorder %s36, 6
    %p327 = por %p325, %p326
    %p328 = scmp.ne.s32.totalorder %s319, %s320
    %p329 = scmp.eq.s32.totalorder %s36, 0
    %p330 = por %p328, %p329
    %p331 = scmp.ne.s32.totalorder %s319, %s320
    %p332 = scmp.eq.s32.totalorder %s37, 6
    %p333 = por %p331, %p332
    %p335 = scmp.ne.s32.totalorder %s320, %s334
    %p336 = scmp.eq.s32.totalorder %s37, 0
    %p337 = por %p335, %p336
    %s339 = sadd.s32 %s338, 1
    %p342 = scmp.eq.s32.totalorder %s31, 6
    %p343 = scmp.ne.s32.totalorder %s338, %s340
    %p344 = scmp.eq.s32.totalorder %s31, 0
    %p345 = por %p343, %p344
    %p346 = scmp.ne.s32.totalorder %s338, %s340
    %p347 = scmp.eq.s32.totalorder %s36, 6
    %p348 = por %p346, %p347
    %p349 = scmp.ne.s32.totalorder %s340, %s341
    %p350 = scmp.eq.s32.totalorder %s36, 0
    %p351 = por %p349, %p350
    %p352 = scmp.ne.s32.totalorder %s340, %s341
    %p353 = scmp.eq.s32.totalorder %s37, 6
    %p354 = por %p352, %p353
    %p356 = scmp.ne.s32.totalorder %s341, %s355
    %p357 = scmp.eq.s32.totalorder %s37, 0
    %p358 = por %p356, %p357
    %s360 = sadd.s32 %s359, 1
    %p363 = scmp.eq.s32.totalorder %s31, 6
    %p364 = scmp.ne.s32.totalorder %s359, %s361
    %p365 = scmp.eq.s32.totalorder %s31, 0
    %p366 = por %p364, %p365
    %p367 = scmp.ne.s32.totalorder %s359, %s361
    %p368 = scmp.eq.s32.totalorder %s36, 6
    %p369 = por %p367, %p368
    %p370 = scmp.ne.s32.totalorder %s361, %s362
    %p371 = scmp.eq.s32.totalorder %s36, 0
    %p372 = por %p370, %p371
    %p373 = scmp.ne.s32.totalorder %s361, %s362
    %p374 = scmp.eq.s32.totalorder %s37, 6
    %p375 = por %p373, %p374
    %p377 = scmp.ne.s32.totalorder %s362, %s376
    %p378 = scmp.eq.s32.totalorder %s37, 0
    %p379 = por %p377, %p378
    %s380 = ssub.s32 %s31, %s38
    %p381 = scmp.eq.s32.totalorder %s380, 0
    %s383 = sadd.s32 %s382, 1
    %s384 = scalar_select %p381, %s382, %s383
    %p387 = pneg %p381
    %p388 = scmp.eq.s32.totalorder %s31, 6
    %p389 = por %p387, %p388
    %p390 = scmp.ne.s32.totalorder %s382, %s385
    %p391 = scmp.eq.s32.totalorder %s31, 0
    %p392 = por %p390, %p391
    %p393 = scmp.ne.s32.totalorder %s382, %s385
    %p394 = scmp.eq.s32.totalorder %s36, 6
    %p395 = por %p393, %p394
    %p396 = scmp.ne.s32.totalorder %s385, %s386
    %p397 = scmp.eq.s32.totalorder %s36, 0
    %p398 = por %p396, %p397
    %p399 = scmp.ne.s32.totalorder %s385, %s386
    %p400 = scmp.eq.s32.totalorder %s37, 6
    %p401 = por %p399, %p400
    %p403 = scmp.ne.s32.totalorder %s386, %s402
    %p404 = scmp.eq.s32.totalorder %s37, 0
    %p405 = por %p403, %p404
    %p406 = scmp.le.s32.totalorder 1, %s31
    %p407 = scmp.lt.s32.totalorder %s31, 8
    %p408 = pnand %p406, %p407
    %p409 = pneg %p408
    // Predicated region
    $region9: #{_lsff_forward_impl.3} parent=5 // pred_check
      _
    $region10: #{_lsff_forward_impl.3} parent=5 // pred_check_branch
      %411 = sbr.rel (%p408) target = $region12
    $region11: #{_lsff_forward_impl.3} parent=5 // pred_region
      %s412 = ssub.s32 %s31, 1
      // Predicated region
      $region13: #{_lsff_forward_impl.3} parent=11 // pred_check
        %p413 = pneg %p78
      $region14: #{_lsff_forward_impl.3} parent=11 // pred_check_branch
        %415 = sbr.rel (%p413) target = $region16
      $region15: #{_lsff_forward_impl.3} parent=11 // pred_region
        _
      $region16: #{_lsff_forward_impl.3} parent=11 // pred_fallthru
        _
      // Predicated region
      $region17: #{_lsff_forward_impl.3} parent=11 // pred_check
        %p416 = pneg %p99
      $region18: #{_lsff_forward_impl.3} parent=11 // pred_check_branch
        %418 = sbr.rel (%p416) target = $region20
      $region19: #{_lsff_forward_impl.3} parent=11 // pred_region
        _
      $region20: #{_lsff_forward_impl.3} parent=11 // pred_fallthru
        _
      // Predicated region
      $region21: #{_lsff_forward_impl.3} parent=11 // pred_check
        %p419 = pneg %p120
      $region22: #{_lsff_forward_impl.3} parent=11 // pred_check_branch
        %421 = sbr.rel (%p419) target = $region24
      $region23: #{_lsff_forward_impl.3} parent=11 // pred_region
        _
      $region24: #{_lsff_forward_impl.3} parent=11 // pred_fallthru
        _
      // Predicated region
      $region25: #{_lsff_forward_impl.3} parent=11 // pred_check
        %p422 = pneg %p141
      $region26: #{_lsff_forward_impl.3} parent=11 // pred_check_branch
        %424 = sbr.rel (%p422) target = $region28
      $region27: #{_lsff_forward_impl.3} parent=11 // pred_region
        _
      $region28: #{_lsff_forward_impl.3} parent=11 // pred_fallthru
        _
      // Predicated region
      $region29: #{_lsff_forward_impl.3} parent=11 // pred_check
        %p425 = pneg %p162
      $region30: #{_lsff_forward_impl.3} parent=11 // pred_check_branch
        %427 = sbr.rel (%p425) target = $region32
      $region31: #{_lsff_forward_impl.3} parent=11 // pred_region
        _
      $region32: #{_lsff_forward_impl.3} parent=11 // pred_fallthru
        _
      // Predicated region
      $region33: #{_lsff_forward_impl.3} parent=11 // pred_check
        %p428 = pneg %p183
      $region34: #{_lsff_forward_impl.3} parent=11 // pred_check_branch
        %430 = sbr.rel (%p428) target = $region36
      $region35: #{_lsff_forward_impl.3} parent=11 // pred_region
        _
      $region36: #{_lsff_forward_impl.3} parent=11 // pred_fallthru
        _
      // Predicated region
      $region37: #{_lsff_forward_impl.3} parent=11 // pred_check
        %p431 = pneg %p204
      $region38: #{_lsff_forward_impl.3} parent=11 // pred_check_branch
        %433 = sbr.rel (%p431) target = $region40
      $region39: #{_lsff_forward_impl.3} parent=11 // pred_region
        _
      $region40: #{_lsff_forward_impl.3} parent=11 // pred_fallthru
        _
      // Predicated region
      $region41: #{_lsff_forward_impl.3} parent=11 // pred_check
        %p434 = pneg %p225
      $region42: #{_lsff_forward_impl.3} parent=11 // pred_check_branch
        %436 = sbr.rel (%p434) target = $region44
      $region43: #{_lsff_forward_impl.3} parent=11 // pred_region
        _
      $region44: #{_lsff_forward_impl.3} parent=11 // pred_fallthru
        _
      // Predicated region
      $region45: #{_lsff_forward_impl.3} parent=11 // pred_check
        %p437 = pneg %p246
      $region46: #{_lsff_forward_impl.3} parent=11 // pred_check_branch
        %439 = sbr.rel (%p437) target = $region48
      $region47: #{_lsff_forward_impl.3} parent=11 // pred_region
        _
      $region48: #{_lsff_forward_impl.3} parent=11 // pred_fallthru
        _
      // Predicated region
      $region49: #{_lsff_forward_impl.3} parent=11 // pred_check
        %p440 = pneg %p267
      $region50: #{_lsff_forward_impl.3} parent=11 // pred_check_branch
        %442 = sbr.rel (%p440) target = $region52
      $region51: #{_lsff_forward_impl.3} parent=11 // pred_region
        _
      $region52: #{_lsff_forward_impl.3} parent=11 // pred_fallthru
        _
      // Predicated region
      $region53: #{_lsff_forward_impl.3} parent=11 // pred_check
        %p443 = pneg %p288
      $region54: #{_lsff_forward_impl.3} parent=11 // pred_check_branch
        %445 = sbr.rel (%p443) target = $region56
      $region55: #{_lsff_forward_impl.3} parent=11 // pred_region
        _
      $region56: #{_lsff_forward_impl.3} parent=11 // pred_fallthru
        _
      // Predicated region
      $region57: #{_lsff_forward_impl.3} parent=11 // pred_check
        %p446 = pneg %p309
      $region58: #{_lsff_forward_impl.3} parent=11 // pred_check_branch
        %448 = sbr.rel (%p446) target = $region60
      $region59: #{_lsff_forward_impl.3} parent=11 // pred_region
        _
      $region60: #{_lsff_forward_impl.3} parent=11 // pred_fallthru
        _
      // Predicated region
      $region61: #{_lsff_forward_impl.3} parent=11 // pred_check
        %p449 = pneg %p330
      $region62: #{_lsff_forward_impl.3} parent=11 // pred_check_branch
        %451 = sbr.rel (%p449) target = $region64
      $region63: #{_lsff_forward_impl.3} parent=11 // pred_region
        _
      $region64: #{_lsff_forward_impl.3} parent=11 // pred_fallthru
        _
      // Predicated region
      $region65: #{_lsff_forward_impl.3} parent=11 // pred_check
        %p452 = pneg %p351
      $region66: #{_lsff_forward_impl.3} parent=11 // pred_check_branch
        %454 = sbr.rel (%p452) target = $region68
      $region67: #{_lsff_forward_impl.3} parent=11 // pred_region
        _
      $region68: #{_lsff_forward_impl.3} parent=11 // pred_fallthru
        _
      // Predicated region
      $region69: #{_lsff_forward_impl.3} parent=11 // pred_check
        %p455 = pneg %p372
      $region70: #{_lsff_forward_impl.3} parent=11 // pred_check_branch
        %457 = sbr.rel (%p455) target = $region72
      $region71: #{_lsff_forward_impl.3} parent=11 // pred_region
        _
      $region72: #{_lsff_forward_impl.3} parent=11 // pred_fallthru
        _
    $region12: #{_lsff_forward_impl.3} parent=5 // pred_fallthru
      _
    %p458 = scmp.lt.s32.totalorder %s31, 7
    // Predicated region
    $region73: #{_lsff_forward_impl.3} parent=5 // pred_check
      %p459 = pneg %p458
    $region74: #{_lsff_forward_impl.3} parent=5 // pred_check_branch
      %461 = sbr.rel (%p459) target = $region76
    $region75: #{_lsff_forward_impl.3} parent=5 // pred_region
      // Predicated region
      $region77: #{_lsff_forward_impl.3} parent=75 // pred_check
        %p462 = pneg %p51
      $region78: #{_lsff_forward_impl.3} parent=75 // pred_check_branch
        %464 = sbr.rel (%p462) target = $region80
      $region79: #{_lsff_forward_impl.3} parent=75 // pred_region
        %p465 = scmp.lt.s32.totalorder %s31, 6
        %s466 = scalar_select %p465, %s31, 6
        %s467 = smul.addr %s466, 8
        %s468 = scalar_lea.vmem %s1, %s467
      $region80: #{_lsff_forward_impl.3} parent=75 // pred_fallthru
        _
    $region76: #{_lsff_forward_impl.3} parent=5 // pred_fallthru
      _
    %p469 = scmp.le.s32.totalorder 1, %s31
    %p470 = scmp.lt.s32.totalorder %s31, 8
    %p471 = pnand %p469, %p470
    %p472 = pneg %p471
    // Predicated region
    $region81: #{_lsff_forward_impl.3} parent=5 // pred_check
      _
    $region82: #{_lsff_forward_impl.3} parent=5 // pred_check_branch
      %474 = sbr.rel (%p471) target = $region84
    $region83: #{_lsff_forward_impl.3} parent=5 // pred_region
      %s475 = ssub.s32 %s31, 1
      %p476 = scmp.lt.s32.totalorder %s36, 6
      %s477 = scalar_select %p476, %s36, 6
      %s478 = smul.addr %s477, 8
      %s479 = scalar_lea.vmem %s1, %s478
      %p480 = pneg %p57
      %p481 = pneg %p54
      %p482 = pneg %p78
      %p483 = pneg %p75
      %p484 = pneg %p99
      %p485 = pneg %p96
      %p486 = pneg %p120
      %p487 = pneg %p117
      %p488 = pneg %p141
      %p489 = pneg %p138
      %p490 = pneg %p162
      %p491 = pneg %p159
      %p492 = pneg %p183
      %p493 = pneg %p180
      %p494 = pneg %p204
      %p495 = pneg %p201
      %p496 = pneg %p225
      %p497 = pneg %p222
      %p498 = pneg %p246
      %p499 = pneg %p243
      %p500 = pneg %p267
      %p501 = pneg %p264
      %p502 = pneg %p288
      %p503 = pneg %p285
      %p504 = pneg %p309
      %p505 = pneg %p306
      %p506 = pneg %p330
      %p507 = pneg %p327
      %p508 = pneg %p351
      %p509 = pneg %p348
      %p510 = pneg %p372
      %p511 = pneg %p369
      %p512 = pneg %p398
      %p513 = pneg %p395
      %p514 = scmp.lt.s32.totalorder %s36, 6
      %s515 = scalar_select %p514, %s36, 6
      %s516 = smul.addr %s515, 8
      %s517 = scalar_lea.vmem %s17, %s516
      %p518 = scmp.lt.s32.totalorder %s36, 6
      %s519 = scalar_select %p518, %s36, 6
      %s520 = smul.addr %s519, 8
      %s521 = scalar_lea.vmem %s1, %s520
      %p522 = scmp.lt.s32.totalorder %s36, 6
      %s523 = scalar_select %p522, %s36, 6
      %s524 = smul.addr %s523, 8
      %s525 = scalar_lea.vmem %s17, %s524
      %p526 = scmp.eq.s32.totalorder %s36, 0
      // Predicated region
      $region85: #{_lsff_forward_impl.3} parent=83 // pred_check
        %p527 = pneg %p526
      $region86: #{_lsff_forward_impl.3} parent=83 // pred_check_branch
        %529 = sbr.rel (%p527) target = $region88
      $region87: #{_lsff_forward_impl.3} parent=83 // pred_region
        %vm530 = vcmask 261120
        %531 = vst.msk [vmem:[#allocation2] sm:$0xff] %vm530, 0.0
        %532 = vst.msk [vmem:[#allocation3] sm:$0xff] %vm530, 0.0
        %533 = vst.msk [vmem:[#allocation4] sm:$0xff] %vm530, 0.0
        %534 = vst.msk [vmem:[#allocation5] sm:$0xff] %vm530, 0.0
      $region88: #{_lsff_forward_impl.3} parent=83 // pred_fallthru
        _
      %s535 = sld [smem:[#allocation7 + %s36]]
      %p536 = scmp.eq.s32.totalorder %s535, 0
      // Predicated region
      $region89: #{_lsff_forward_impl.3} parent=83 // pred_check
        %p537 = pneg %p536
      $region90: #{_lsff_forward_impl.3} parent=83 // pred_check_branch
        %539 = sbr.rel (%p537) target = $region92
      $region91: #{_lsff_forward_impl.3} parent=83 // pred_region
        %540 = vst [vmem:[%s525] sm:$0xff] 0.0
      $region92: #{_lsff_forward_impl.3} parent=83 // pred_fallthru
        _
      %p541 = scmp.eq.s32.totalorder %s535, 1
      // Predicated region
      $region93: #{_lsff_forward_impl.3} parent=83 // pred_check
        %p542 = pneg %p541
      $region94: #{_lsff_forward_impl.3} parent=83 // pred_check_branch
        %544 = sbr.rel (%p542) target = $region96
      $region95: #{_lsff_forward_impl.3} parent=83 // pred_region
        %v545 = vld [vmem:[%s521] sm:$0xff]
        %v546 = vld [vmem:[#allocation2] sm:$0xff]
        %v547 = vld [vmem:[#allocation3] sm:$0xff]
        %v548 = vld [vmem:[#allocation4] sm:$0xff]
        %v549 = vld [vmem:[#allocation5] sm:$0xff]
        %v550 = vld [vmem:[%s5] sm:$0xff]
        %v551 = vld [vmem:[%s5 + $0x8] sm:$0xff]
        %v552 = vld [vmem:[%s5 + $0x10] sm:$0xff]
        %v553 = vld [vmem:[%s5 + $0x18] sm:$0xff]
        %v554 = vld [vmem:[%s6] sm:$0xff]
        %v555 = vld [vmem:[%s6 + $0x8] sm:$0xff]
        %vm556 = vcmask 130048
        %v558 = vsel %vm556, %v545, 0
        %560 = vmatpush.msra.mxu0 0.0
        %561 = vmatpush.msra.mxu0 0.0
        %562 = vmatpush.msra.mxu0 0.0
        %563 = vmatpush.msra.mxu0 0.0
        %564 = vmatpush.msra.mxu0 0.0
        %565 = vmatpush.msra.mxu0 0.0
        %566 = vmatpush.msra.mxu0 0.0
        %567 = vmatpush.msra.mxu0 0.0
        %568 = vmatpush.msra.mxu0 0.0
        %569 = vmatpush.msra.mxu0 0.0
        %570 = vmatpush.msra.mxu0 0.0
        %571 = vmatpush.msra.mxu0 0.0
        %572 = vmatpush.msra.mxu0 0.0
        %573 = vmatpush.msra.mxu0 0.0
        %574 = vmatpush.msra.mxu0 %v555
        %575 = vmatpush.msra.mxu0 %v554
        %576 = vmatmul.f32.gmra.mxu0 %v558
        %v577 = vpop.f32.mrf.mxu0
        %v578 = vadd.f32 0.0, %v577
        %579 = vdwg.mxu0
        %vm580 = vcmask 261120
        %v582 = vsel %vm580, %v548, 0
        %584 = vmatpush.msra.mxu0 0.0
        %585 = vmatpush.msra.mxu0 0.0
        %586 = vmatpush.msra.mxu0 0.0
        %587 = vmatpush.msra.mxu0 0.0
        %588 = vmatpush.msra.mxu0 0.0
        %589 = vmatpush.msra.mxu0 0.0
        %590 = vmatpush.msra.mxu0 0.0
        %591 = vmatpush.msra.mxu0 0.0
        %592 = vmatpush.msra.mxu0 0.0
        %593 = vmatpush.msra.mxu0 0.0
        %594 = vmatpush.msra.mxu0 0.0
        %595 = vmatpush.msra.mxu0 0.0
        %596 = vmatpush.msra.mxu0 %v553
        %597 = vmatpush.msra.mxu0 %v552
        %598 = vmatpush.msra.mxu0 %v551
        %599 = vmatpush.msra.mxu0 %v550
        %600 = vmatmul.f32.gmra.mxu0 %v582
        %v601 = vpop.f32.mrf.mxu0
        %v602 = vadd.f32 %v578, %v601
        %603 = vdwg.mxu0
        %v604 = vld [vmem:[%s7] sm:$0xff]
        %v605 = vld [vmem:[%s7 + $0x8] sm:$0xff]
        %v606 = vld [vmem:[%s7 + $0x10] sm:$0xff]
        %v607 = vld [vmem:[%s7 + $0x18] sm:$0xff]
        %v609 = vsel %vm580, %v546, 0
        %611 = vmatpush.msra.mxu0 0.0
        %612 = vmatpush.msra.mxu0 0.0
        %613 = vmatpush.msra.mxu0 0.0
        %614 = vmatpush.msra.mxu0 0.0
        %615 = vmatpush.msra.mxu0 0.0
        %616 = vmatpush.msra.mxu0 0.0
        %617 = vmatpush.msra.mxu0 0.0
        %618 = vmatpush.msra.mxu0 0.0
        %619 = vmatpush.msra.mxu0 0.0
        %620 = vmatpush.msra.mxu0 0.0
        %621 = vmatpush.msra.mxu0 0.0
        %622 = vmatpush.msra.mxu0 0.0
        %623 = vmatpush.msra.mxu0 %v607
        %624 = vmatpush.msra.mxu0 %v606
        %625 = vmatpush.msra.mxu0 %v605
        %626 = vmatpush.msra.mxu0 %v604
        %627 = vmatmul.f32.gmra.mxu0 %v609
        %v628 = vpop.f32.mrf.mxu0
        %v629 = vadd.f32 0.0, %v628
        %630 = vdwg.mxu0
        %v631 = vadd.f32 %v602, %v629
        %v632 = vld [vmem:[%s2] sm:$0xff]
        %v633 = vadd.f32 %v631, %v632
        %v634 = vxor.u32 %v633, 2147483648
        %v635 = vmul.f32 %v634, 1.442695
        %v636 = vpow.pop %v635
        %v637 = vadd.f32 %v636, 1.0
        %v638 = vrcp.pop %v637
        %v639 = vmul.f32 %v637, %v638
        %v640 = vsub.f32 1.0, %v639
        %v641 = vmul.f32 %v638, %v640
        %v642 = vadd.f32 %v638, %v641
        %vm643 = vweird.f32 %v637
        %vm644 = vweird.f32 %v638
        %vm645 = vmor %vm643, %vm644
        %v646 = vsel %vm645, %v638, %v642
        %v647 = vand.u32 2147483647, %v637
        %vm648 = vcmp.eq.f32.partialorder %v647, 8.507059e+37
        %v649 = vand.u32 %v637, 2147483648
        %v650 = vor.u32 1.1754944e-38, %v649
        %v651 = vsel %vm648, %v650, %v646
        %v652 = vmul.f32 1.0, %v651
        %v653 = vtanh.pop %v633
        %655 = vrot.lane.b32.xlu0 %v547, 32
        %v656 = vpop.permute.xlu0 %655
        %v658 = vmul.f32 %v652, %v656
        %660 = vrot.lane.b32.xlu0 %v653, 64
        %v661 = vpop.permute.xlu0 %660
        %v663 = vmul.f32 %v652, %v661
        %665 = vrot.lane.b32.xlu0 %v663, 32
        %v666 = vpop.permute.xlu0 %665
        %v668 = vadd.f32 %v658, %v666
        %v669 = vtanh.pop %v668
        %671 = vrot.lane.b32.xlu0 %v669, 64
        %v672 = vpop.permute.xlu0 %671
        %v674 = vmul.f32 %v652, %v672
        %v675 = vld [vmem:[%s12] sm:$0xff]
        %v676 = vld [vmem:[%s12 + $0x8] sm:$0xff]
        %v677 = vld [vmem:[%s12 + $0x10] sm:$0xff]
        %v678 = vld [vmem:[%s12 + $0x18] sm:$0xff]
        %v679 = vld [vmem:[%s13] sm:$0x1]
        %v681 = vperm.slane %v679, 0
        %684 = vrot.lane.b32.xlu0 %v674, 32
        %v685 = vpop.permute.xlu0 %684
        %v686 = vsel %vm580, %v685, 0
        %688 = vmatpush.msra.mxu0 0.0
        %689 = vmatpush.msra.mxu0 0.0
        %690 = vmatpush.msra.mxu0 0.0
        %691 = vmatpush.msra.mxu0 0.0
        %692 = vmatpush.msra.mxu0 0.0
        %693 = vmatpush.msra.mxu0 0.0
        %694 = vmatpush.msra.mxu0 0.0
        %695 = vmatpush.msra.mxu0 0.0
        %696 = vmatpush.msra.mxu0 0.0
        %697 = vmatpush.msra.mxu0 0.0
        %698 = vmatpush.msra.mxu0 0.0
        %699 = vmatpush.msra.mxu0 0.0
        %700 = vmatpush.msra.mxu0 %v678
        %701 = vmatpush.msra.mxu0 %v677
        %702 = vmatpush.msra.mxu0 %v676
        %703 = vmatpush.msra.mxu0 %v675
        %704 = vmatmul.f32.gmra.mxu0 %v686
        %v705 = vpop.f32.mrf.mxu0
        %v706 = vadd.f32 %v681, %v705
        %707 = vdwg.mxu0
        %v708 = vld [vmem:[%s4] sm:$0x3f]
        %v709 = vld [vmem:[%s4 + $0x8] sm:$0x3f]
        %v710 = vld [vmem:[%s4 + $0x10] sm:$0x3f]
        %v711 = vld [vmem:[%s4 + $0x18] sm:$0x3f]
        %v712 = vld [vmem:[%s4 + $0x20] sm:$0x3f]
        %v713 = vld [vmem:[%s4 + $0x28] sm:$0x3f]
        %v714 = vld [vmem:[%s4 + $0x30] sm:$0x3f]
        %v715 = vld [vmem:[%s4 + $0x38] sm:$0x3f]
        %v717 = vrot.slane %v706, 1
        %v718 = vrot.slane %v706, 2
        %v719 = vrot.slane %v706, 3
        %v720 = vrot.slane %v706, 4
        %v721 = vrot.slane %v706, 5
        %v722 = vrot.slane %v706, 6
        %v723 = vrot.slane %v706, 7
        %v724 = vperm.slane %v706, 0
        %v725 = vperm.slane %v717, 0
        %v726 = vperm.slane %v718, 0
        %v727 = vperm.slane %v719, 0
        %v728 = vperm.slane %v720, 0
        %v729 = vperm.slane %v721, 0
        %v730 = vperm.slane %v722, 0
        %v731 = vperm.slane %v723, 0
        %v740 = vadd.f32 %v708, %v724
        %v741 = vadd.f32 %v709, %v725
        %v742 = vadd.f32 %v710, %v726
        %v743 = vadd.f32 %v711, %v727
        %v744 = vadd.f32 %v712, %v728
        %v745 = vadd.f32 %v713, %v729
        %v746 = vadd.f32 %v714, %v730
        %v747 = vadd.f32 %v715, %v731
        %v748 = vtanh.pop %v740
        %v749 = vtanh.pop %v741
        %v750 = vtanh.pop %v742
        %v751 = vtanh.pop %v743
        %v752 = vtanh.pop %v744
        %v753 = vtanh.pop %v745
        %v754 = vtanh.pop %v746
        %v755 = vtanh.pop %v747
        %v756 = vld [vmem:[%s14] sm:$0x1]
        %v758 = vperm.slane %v756, 0
        %v760 = vmul.f32 %v748, %v758
        %v761 = vmul.f32 %v749, %v758
        %v762 = vmul.f32 %v750, %v758
        %v763 = vmul.f32 %v751, %v758
        %v764 = vmul.f32 %v752, %v758
        %v765 = vmul.f32 %v753, %v758
        %v766 = vmul.f32 %v754, %v758
        %v767 = vmul.f32 %v755, %v758
        %vm768 = vcmask 128000
        %v769 = vsel %vm768, %v760, 0.0
        %770 = vadd.xlane.f32.xlu0 %v769
        %v771 = vpop.xlane.xlu0 %770
        %v772 = vsel %vm768, %v761, 0.0
        %773 = vadd.xlane.f32.xlu0 %v772
        %v774 = vpop.xlane.xlu0 %773
        %v775 = vsel %vm768, %v762, 0.0
        %776 = vadd.xlane.f32.xlu0 %v775
        %v777 = vpop.xlane.xlu0 %776
        %v778 = vsel %vm768, %v763, 0.0
        %779 = vadd.xlane.f32.xlu0 %v778
        %v780 = vpop.xlane.xlu0 %779
        %v781 = vsel %vm768, %v764, 0.0
        %782 = vadd.xlane.f32.xlu0 %v781
        %v783 = vpop.xlane.xlu0 %782
        %v784 = vsel %vm768, %v765, 0.0
        %785 = vadd.xlane.f32.xlu0 %v784
        %v786 = vpop.xlane.xlu0 %785
        %v787 = vsel %vm768, %v766, 0.0
        %788 = vadd.xlane.f32.xlu0 %v787
        %v789 = vpop.xlane.xlu0 %788
        %v790 = vsel %vm768, %v767, 0.0
        %791 = vadd.xlane.f32.xlu0 %v790
        %v792 = vpop.xlane.xlu0 %791
        %v801 = vlaneseq
        %v802 = vand.u32 %v801, 127
        %v803 = vperm.slane %v771, %v802
        %v804 = vperm.slane %v774, %v802
        %v805 = vperm.slane %v777, %v802
        %v806 = vperm.slane %v780, %v802
        %v807 = vperm.slane %v783, %v802
        %v808 = vperm.slane %v786, %v802
        %v809 = vperm.slane %v789, %v802
        %v810 = vperm.slane %v792, %v802
        %vm811 = vcmask 1041409
        %v812 = vsel %vm811, %v804, %v803
        %vm813 = vcmask 1042434
        %v814 = vsel %vm813, %v805, %v812
        %vm815 = vcmask 1043459
        %v816 = vsel %vm815, %v806, %v814
        %vm817 = vcmask 1044484
        %v818 = vsel %vm817, %v807, %v816
        %vm819 = vcmask 1045509
        %v820 = vsel %vm819, %v808, %v818
        %vm821 = vcmask 1046534
        %v822 = vsel %vm821, %v809, %v820
        %vm823 = vcmask 1047559
        %v824 = vsel %vm823, %v810, %v822
        %vm826 = vcmask 48128
        %v827 = vsel %vm826, %v824, -inf
        %828 = vmax.xlane.f32.xlu0 %v827
        %v829 = vpop.xlane.xlu0 %828
        %v831 = vperm.slane %v829, 0
        %v832 = vperm.slane %v829, 1
        %v833 = vperm.slane %v829, 2
        %v834 = vperm.slane %v829, 3
        %v835 = vperm.slane %v829, 4
        %v836 = vperm.slane %v829, 5
        %v837 = vperm.slane %v829, 6
        %v838 = vperm.slane %v829, 7
        %v847 = vsub.f32 %v771, %v831
        %v848 = vsub.f32 %v774, %v832
        %v849 = vsub.f32 %v777, %v833
        %v850 = vsub.f32 %v780, %v834
        %v851 = vsub.f32 %v783, %v835
        %v852 = vsub.f32 %v786, %v836
        %v853 = vsub.f32 %v789, %v837
        %v854 = vsub.f32 %v792, %v838
        %v855 = vmul.f32 %v847, 1.442695
        %v856 = vpow.pop %v855
        %v857 = vmul.f32 %v848, 1.442695
        %v858 = vpow.pop %v857
        %v859 = vmul.f32 %v849, 1.442695
        %v860 = vpow.pop %v859
        %v861 = vmul.f32 %v850, 1.442695
        %v862 = vpow.pop %v861
        %v863 = vmul.f32 %v851, 1.442695
        %v864 = vpow.pop %v863
        %v865 = vmul.f32 %v852, 1.442695
        %v866 = vpow.pop %v865
        %v867 = vmul.f32 %v853, 1.442695
        %v868 = vpow.pop %v867
        %v869 = vmul.f32 %v854, 1.442695
        %v870 = vpow.pop %v869
        %879 = vset.pattern.permute.xlu0 0
        %880 = vperm.xlu0 %879, %v856
        %v881 = vpop.permute.xlu0 %880
        %882 = vset.pattern.permute.xlu0 0
        %883 = vperm.xlu0 %882, %v858
        %v884 = vpop.permute.xlu0 %883
        %885 = vset.pattern.permute.xlu0 0
        %886 = vperm.xlu0 %885, %v860
        %v887 = vpop.permute.xlu0 %886
        %888 = vset.pattern.permute.xlu0 0
        %889 = vperm.xlu0 %888, %v862
        %v890 = vpop.permute.xlu0 %889
        %891 = vset.pattern.permute.xlu0 0
        %892 = vperm.xlu0 %891, %v864
        %v893 = vpop.permute.xlu0 %892
        %894 = vset.pattern.permute.xlu0 0
        %895 = vperm.xlu0 %894, %v866
        %v896 = vpop.permute.xlu0 %895
        %897 = vset.pattern.permute.xlu0 0
        %898 = vperm.xlu0 %897, %v868
        %v899 = vpop.permute.xlu0 %898
        %900 = vset.pattern.permute.xlu0 0
        %901 = vperm.xlu0 %900, %v870
        %v902 = vpop.permute.xlu0 %901
        %v903 = vperm.slane %v881, %v802
        %v904 = vperm.slane %v884, %v802
        %v905 = vperm.slane %v887, %v802
        %v906 = vperm.slane %v890, %v802
        %v907 = vperm.slane %v893, %v802
        %v908 = vperm.slane %v896, %v802
        %v909 = vperm.slane %v899, %v802
        %v910 = vperm.slane %v902, %v802
        %v911 = vsel %vm811, %v904, %v903
        %v912 = vsel %vm813, %v905, %v911
        %v913 = vsel %vm815, %v906, %v912
        %v914 = vsel %vm817, %v907, %v913
        %v915 = vsel %vm819, %v908, %v914
        %v916 = vsel %vm821, %v909, %v915
        %v917 = vsel %vm823, %v910, %v916
        %v919 = vsel %vm826, %v917, 0.0
        %920 = vadd.xlane.f32.xlu0 %v919
        %v921 = vpop.xlane.xlu0 %920
        %v923 = vperm.slane %v921, 0
        %v924 = vperm.slane %v921, 1
        %v925 = vperm.slane %v921, 2
        %v926 = vperm.slane %v921, 3
        %v927 = vperm.slane %v921, 4
        %v928 = vperm.slane %v921, 5
        %v929 = vperm.slane %v921, 6
        %v930 = vperm.slane %v921, 7
        %v939 = vrcp.pop %v923
        %v940 = vmul.f32 %v923, %v939
        %v941 = vsub.f32 1.0, %v940
        %v942 = vmul.f32 %v939, %v941
        %v943 = vadd.f32 %v939, %v942
        %vm944 = vweird.f32 %v923
        %vm945 = vweird.f32 %v939
        %vm946 = vmor %vm944, %vm945
        %v947 = vsel %vm946, %v939, %v943
        %v948 = vand.u32 2147483647, %v923
        %vm949 = vcmp.eq.f32.partialorder %v948, 8.507059e+37
        %v950 = vand.u32 %v923, 2147483648
        %v951 = vor.u32 1.1754944e-38, %v950
        %v952 = vsel %vm949, %v951, %v947
        %v953 = vmul.f32 %v856, %v952
        %v954 = vrcp.pop %v924
        %v955 = vmul.f32 %v924, %v954
        %v956 = vsub.f32 1.0, %v955
        %v957 = vmul.f32 %v954, %v956
        %v958 = vadd.f32 %v954, %v957
        %vm959 = vweird.f32 %v924
        %vm960 = vweird.f32 %v954
        %vm961 = vmor %vm959, %vm960
        %v962 = vsel %vm961, %v954, %v958
        %v963 = vand.u32 2147483647, %v924
        %vm964 = vcmp.eq.f32.partialorder %v963, 8.507059e+37
        %v965 = vand.u32 %v924, 2147483648
        %v966 = vor.u32 1.1754944e-38, %v965
        %v967 = vsel %vm964, %v966, %v962
        %v968 = vmul.f32 %v858, %v967
        %v969 = vrcp.pop %v925
        %v970 = vmul.f32 %v925, %v969
        %v971 = vsub.f32 1.0, %v970
        %v972 = vmul.f32 %v969, %v971
        %v973 = vadd.f32 %v969, %v972
        %vm974 = vweird.f32 %v925
        %vm975 = vweird.f32 %v969
        %vm976 = vmor %vm974, %vm975
        %v977 = vsel %vm976, %v969, %v973
        %v978 = vand.u32 2147483647, %v925
        %vm979 = vcmp.eq.f32.partialorder %v978, 8.507059e+37
        %v980 = vand.u32 %v925, 2147483648
        %v981 = vor.u32 1.1754944e-38, %v980
        %v982 = vsel %vm979, %v981, %v977
        %v983 = vmul.f32 %v860, %v982
        %v984 = vrcp.pop %v926
        %v985 = vmul.f32 %v926, %v984
        %v986 = vsub.f32 1.0, %v985
        %v987 = vmul.f32 %v984, %v986
        %v988 = vadd.f32 %v984, %v987
        %vm989 = vweird.f32 %v926
        %vm990 = vweird.f32 %v984
        %vm991 = vmor %vm989, %vm990
        %v992 = vsel %vm991, %v984, %v988
        %v993 = vand.u32 2147483647, %v926
        %vm994 = vcmp.eq.f32.partialorder %v993, 8.507059e+37
        %v995 = vand.u32 %v926, 2147483648
        %v996 = vor.u32 1.1754944e-38, %v995
        %v997 = vsel %vm994, %v996, %v992
        %v998 = vmul.f32 %v862, %v997
        %v999 = vrcp.pop %v927
        %v1000 = vmul.f32 %v927, %v999
        %v1001 = vsub.f32 1.0, %v1000
        %v1002 = vmul.f32 %v999, %v1001
        %v1003 = vadd.f32 %v999, %v1002
        %vm1004 = vweird.f32 %v927
        %vm1005 = vweird.f32 %v999
        %vm1006 = vmor %vm1004, %vm1005
        %v1007 = vsel %vm1006, %v999, %v1003
        %v1008 = vand.u32 2147483647, %v927
        %vm1009 = vcmp.eq.f32.partialorder %v1008, 8.507059e+37
        %v1010 = vand.u32 %v927, 2147483648
        %v1011 = vor.u32 1.1754944e-38, %v1010
        %v1012 = vsel %vm1009, %v1011, %v1007
        %v1013 = vmul.f32 %v864, %v1012
        %v1014 = vrcp.pop %v928
        %v1015 = vmul.f32 %v928, %v1014
        %v1016 = vsub.f32 1.0, %v1015
        %v1017 = vmul.f32 %v1014, %v1016
        %v1018 = vadd.f32 %v1014, %v1017
        %vm1019 = vweird.f32 %v928
        %vm1020 = vweird.f32 %v1014
        %vm1021 = vmor %vm1019, %vm1020
        %v1022 = vsel %vm1021, %v1014, %v1018
        %v1023 = vand.u32 2147483647, %v928
        %vm1024 = vcmp.eq.f32.partialorder %v1023, 8.507059e+37
        %v1025 = vand.u32 %v928, 2147483648
        %v1026 = vor.u32 1.1754944e-38, %v1025
        %v1027 = vsel %vm1024, %v1026, %v1022
        %v1028 = vmul.f32 %v866, %v1027
        %v1029 = vrcp.pop %v929
        %v1030 = vmul.f32 %v929, %v1029
        %v1031 = vsub.f32 1.0, %v1030
        %v1032 = vmul.f32 %v1029, %v1031
        %v1033 = vadd.f32 %v1029, %v1032
        %vm1034 = vweird.f32 %v929
        %vm1035 = vweird.f32 %v1029
        %vm1036 = vmor %vm1034, %vm1035
        %v1037 = vsel %vm1036, %v1029, %v1033
        %v1038 = vand.u32 2147483647, %v929
        %vm1039 = vcmp.eq.f32.partialorder %v1038, 8.507059e+37
        %v1040 = vand.u32 %v929, 2147483648
        %v1041 = vor.u32 1.1754944e-38, %v1040
        %v1042 = vsel %vm1039, %v1041, %v1037
        %v1043 = vmul.f32 %v868, %v1042
        %v1044 = vrcp.pop %v930
        %v1045 = vmul.f32 %v930, %v1044
        %v1046 = vsub.f32 1.0, %v1045
        %v1047 = vmul.f32 %v1044, %v1046
        %v1048 = vadd.f32 %v1044, %v1047
        %vm1049 = vweird.f32 %v930
        %vm1050 = vweird.f32 %v1044
        %vm1051 = vmor %vm1049, %vm1050
        %v1052 = vsel %vm1051, %v1044, %v1048
        %v1053 = vand.u32 2147483647, %v930
        %vm1054 = vcmp.eq.f32.partialorder %v1053, 8.507059e+37
        %v1055 = vand.u32 %v930, 2147483648
        %v1056 = vor.u32 1.1754944e-38, %v1055
        %v1057 = vsel %vm1054, %v1056, %v1052
        %v1058 = vmul.f32 %v870, %v1057
        %v1059 = vld [vmem:[%s3] sm:$0x3f]
        %v1060 = vld [vmem:[%s3 + $0x8] sm:$0x3f]
        %v1061 = vld [vmem:[%s3 + $0x10] sm:$0x3f]
        %v1062 = vld [vmem:[%s3 + $0x18] sm:$0x3f]
        %v1063 = vld [vmem:[%s3 + $0x20] sm:$0x3f]
        %v1064 = vld [vmem:[%s3 + $0x28] sm:$0x3f]
        %v1065 = vld [vmem:[%s3 + $0x30] sm:$0x3f]
        %v1066 = vld [vmem:[%s3 + $0x38] sm:$0x3f]
        %1068 = vset.pattern.permute.xlu0 0
        %1069 = vperm.xlu0 %1068, %v953
        %v1070 = vpop.permute.xlu0 %1069
        %1073 = vset.pattern.permute.xlu0 0
        %1074 = vperm.xlu0 %1073, %v968
        %v1075 = vpop.permute.xlu0 %1074
        %1078 = vset.pattern.permute.xlu0 0
        %1079 = vperm.xlu0 %1078, %v983
        %v1080 = vpop.permute.xlu0 %1079
        %1083 = vset.pattern.permute.xlu0 0
        %1084 = vperm.xlu0 %1083, %v998
        %v1085 = vpop.permute.xlu0 %1084
        %1088 = vset.pattern.permute.xlu0 0
        %1089 = vperm.xlu0 %1088, %v1013
        %v1090 = vpop.permute.xlu0 %1089
        %1093 = vset.pattern.permute.xlu0 0
        %1094 = vperm.xlu0 %1093, %v1028
        %v1095 = vpop.permute.xlu0 %1094
        %1098 = vset.pattern.permute.xlu0 0
        %1099 = vperm.xlu0 %1098, %v1043
        %v1100 = vpop.permute.xlu0 %1099
        %1103 = vset.pattern.permute.xlu0 0
        %1104 = vperm.xlu0 %1103, %v1058
        %v1105 = vpop.permute.xlu0 %1104
        %v1107 = vmul.f32 %v1070, %v1059
        %v1108 = vmul.f32 %v1075, %v1060
        %v1109 = vmul.f32 %v1080, %v1061
        %v1110 = vmul.f32 %v1085, %v1062
        %v1111 = vmul.f32 %v1090, %v1063
        %v1112 = vmul.f32 %v1095, %v1064
        %v1113 = vmul.f32 %v1100, %v1065
        %v1114 = vmul.f32 %v1105, %v1066
        %vm1115 = vcmask 259072
        %v1116 = vsel %vm1115, %v1107, 0.0
        %v1117 = vrot.slane %v1116, 4
        %v1118 = vadd.f32 %v1116, %v1117
        %v1119 = vrot.slane %v1118, 2
        %v1120 = vadd.f32 %v1118, %v1119
        %v1121 = vrot.slane %v1120, 1
        %v1122 = vadd.f32 %v1120, %v1121
        %v1123 = vsel %vm1115, %v1108, 0.0
        %v1124 = vrot.slane %v1123, 4
        %v1125 = vadd.f32 %v1123, %v1124
        %v1126 = vrot.slane %v1125, 2
        %v1127 = vadd.f32 %v1125, %v1126
        %v1128 = vrot.slane %v1127, 1
        %v1129 = vadd.f32 %v1127, %v1128
        %v1130 = vsel %vm1115, %v1109, 0.0
        %v1131 = vrot.slane %v1130, 4
        %v1132 = vadd.f32 %v1130, %v1131
        %v1133 = vrot.slane %v1132, 2
        %v1134 = vadd.f32 %v1132, %v1133
        %v1135 = vrot.slane %v1134, 1
        %v1136 = vadd.f32 %v1134, %v1135
        %v1137 = vsel %vm1115, %v1110, 0.0
        %v1138 = vrot.slane %v1137, 4
        %v1139 = vadd.f32 %v1137, %v1138
        %v1140 = vrot.slane %v1139, 2
        %v1141 = vadd.f32 %v1139, %v1140
        %v1142 = vrot.slane %v1141, 1
        %v1143 = vadd.f32 %v1141, %v1142
        %v1144 = vsel %vm1115, %v1111, 0.0
        %v1145 = vrot.slane %v1144, 4
        %v1146 = vadd.f32 %v1144, %v1145
        %v1147 = vrot.slane %v1146, 2
        %v1148 = vadd.f32 %v1146, %v1147
        %v1149 = vrot.slane %v1148, 1
        %v1150 = vadd.f32 %v1148, %v1149
        %v1151 = vsel %vm1115, %v1112, 0.0
        %v1152 = vrot.slane %v1151, 4
        %v1153 = vadd.f32 %v1151, %v1152
        %v1154 = vrot.slane %v1153, 2
        %v1155 = vadd.f32 %v1153, %v1154
        %v1156 = vrot.slane %v1155, 1
        %v1157 = vadd.f32 %v1155, %v1156
        %v1158 = vsel %vm1115, %v1113, 0.0
        %v1159 = vrot.slane %v1158, 4
        %v1160 = vadd.f32 %v1158, %v1159
        %v1161 = vrot.slane %v1160, 2
        %v1162 = vadd.f32 %v1160, %v1161
        %v1163 = vrot.slane %v1162, 1
        %v1164 = vadd.f32 %v1162, %v1163
        %v1165 = vsel %vm1115, %v1114, 0.0
        %v1166 = vrot.slane %v1165, 4
        %v1167 = vadd.f32 %v1165, %v1166
        %v1168 = vrot.slane %v1167, 2
        %v1169 = vadd.f32 %v1167, %v1168
        %v1170 = vrot.slane %v1169, 1
        %v1171 = vadd.f32 %v1169, %v1170
        %v1172 = vld [vmem:[%s8] sm:$0xff]
        %v1173 = vld [vmem:[%s8 + $0x8] sm:$0xff]
        %v1174 = vld [vmem:[%s8 + $0x10] sm:$0xff]
        %v1175 = vld [vmem:[%s8 + $0x18] sm:$0xff]
        %v1176 = vld [vmem:[%s9] sm:$0xff]
        %v1177 = vld [vmem:[%s9 + $0x8] sm:$0xff]
        %v1178 = vld [vmem:[%s9 + $0x10] sm:$0xff]
        %v1179 = vld [vmem:[%s9 + $0x18] sm:$0xff]
        %1180 = vmatpush.msra.mxu0 0.0
        %1181 = vmatpush.msra.mxu0 0.0
        %1182 = vmatpush.msra.mxu0 0.0
        %1183 = vmatpush.msra.mxu0 0.0
        %1184 = vmatpush.msra.mxu0 0.0
        %1185 = vmatpush.msra.mxu0 0.0
        %1186 = vmatpush.msra.mxu0 0.0
        %1187 = vmatpush.msra.mxu0 0.0
        %1188 = vmatpush.msra.mxu0 0.0
        %1189 = vmatpush.msra.mxu0 0.0
        %1190 = vmatpush.msra.mxu0 0.0
        %1191 = vmatpush.msra.mxu0 0.0
        %1192 = vmatpush.msra.mxu0 %v1179
        %1193 = vmatpush.msra.mxu0 %v1178
        %1194 = vmatpush.msra.mxu0 %v1177
        %1195 = vmatpush.msra.mxu0 %v1176
        %1196 = vmatmul.f32.gmra.mxu0 %v686
        %v1197 = vpop.f32.mrf.mxu0
        %v1198 = vadd.f32 0.0, %v1197
        %1199 = vdwg.mxu0
        %v1208 = vsel %vm811, %v1129, %v1122
        %v1209 = vsel %vm813, %v1136, %v1208
        %v1210 = vsel %vm815, %v1143, %v1209
        %v1211 = vsel %vm817, %v1150, %v1210
        %v1212 = vsel %vm819, %v1157, %v1211
        %v1213 = vsel %vm821, %v1164, %v1212
        %v1214 = vsel %vm823, %v1171, %v1213
        %v1215 = vsel %vm580, %v1214, 0
        %1217 = vmatpush.msra.mxu0 0.0
        %1218 = vmatpush.msra.mxu0 0.0
        %1219 = vmatpush.msra.mxu0 0.0
        %1220 = vmatpush.msra.mxu0 0.0
        %1221 = vmatpush.msra.mxu0 0.0
        %1222 = vmatpush.msra.mxu0 0.0
        %1223 = vmatpush.msra.mxu0 0.0
        %1224 = vmatpush.msra.mxu0 0.0
        %1225 = vmatpush.msra.mxu0 0.0
        %1226 = vmatpush.msra.mxu0 0.0
        %1227 = vmatpush.msra.mxu0 0.0
        %1228 = vmatpush.msra.mxu0 0.0
        %1229 = vmatpush.msra.mxu0 %v1175
        %1230 = vmatpush.msra.mxu0 %v1174
        %1231 = vmatpush.msra.mxu0 %v1173
        %1232 = vmatpush.msra.mxu0 %v1172
        %1233 = vmatmul.f32.gmra.mxu0 %v1215
        %v1234 = vpop.f32.mrf.mxu0
        %v1235 = vadd.f32 %v1198, %v1234
        %1236 = vdwg.mxu0
        %v1237 = vld [vmem:[%s10] sm:$0xff]
        %v1238 = vld [vmem:[%s10 + $0x8] sm:$0xff]
        %v1239 = vld [vmem:[%s10 + $0x10] sm:$0xff]
        %v1240 = vld [vmem:[%s10 + $0x18] sm:$0xff]
        %1241 = vmatpush.msra.mxu0 0.0
        %1242 = vmatpush.msra.mxu0 0.0
        %1243 = vmatpush.msra.mxu0 0.0
        %1244 = vmatpush.msra.mxu0 0.0
        %1245 = vmatpush.msra.mxu0 0.0
        %1246 = vmatpush.msra.mxu0 0.0
        %1247 = vmatpush.msra.mxu0 0.0
        %1248 = vmatpush.msra.mxu0 0.0
        %1249 = vmatpush.msra.mxu0 0.0
        %1250 = vmatpush.msra.mxu0 0.0
        %1251 = vmatpush.msra.mxu0 0.0
        %1252 = vmatpush.msra.mxu0 0.0
        %1253 = vmatpush.msra.mxu0 %v1240
        %1254 = vmatpush.msra.mxu0 %v1239
        %1255 = vmatpush.msra.mxu0 %v1238
        %1256 = vmatpush.msra.mxu0 %v1237
        %1257 = vmatmul.f32.gmra.mxu0 %v582
        %v1258 = vpop.f32.mrf.mxu0
        %v1259 = vadd.f32 0.0, %v1258
        %1260 = vdwg.mxu0
        %v1261 = vadd.f32 %v1235, %v1259
        %v1262 = vld [vmem:[%s11] sm:$0x1]
        %v1264 = vperm.slane %v1262, 0
        %v1266 = vadd.f32 %v1261, %v1264
        %v1267 = vxor.u32 %v1266, 2147483648
        %v1268 = vmul.f32 %v1267, 1.442695
        %v1269 = vpow.pop %v1268
        %v1270 = vadd.f32 %v1269, 1.0
        %v1271 = vrcp.pop %v1270
        %v1272 = vmul.f32 %v1270, %v1271
        %v1273 = vsub.f32 1.0, %v1272
        %v1274 = vmul.f32 %v1271, %v1273
        %v1275 = vadd.f32 %v1271, %v1274
        %vm1276 = vweird.f32 %v1270
        %vm1277 = vweird.f32 %v1271
        %vm1278 = vmor %vm1276, %vm1277
        %v1279 = vsel %vm1278, %v1271, %v1275
        %v1280 = vand.u32 2147483647, %v1270
        %vm1281 = vcmp.eq.f32.partialorder %v1280, 8.507059e+37
        %v1282 = vand.u32 %v1270, 2147483648
        %v1283 = vor.u32 1.1754944e-38, %v1282
        %v1284 = vsel %vm1281, %v1283, %v1279
        %v1285 = vmul.f32 1.0, %v1284
        %v1286 = vtanh.pop %v1266
        %1288 = vrot.lane.b32.xlu0 %v549, 32
        %v1289 = vpop.permute.xlu0 %1288
        %v1291 = vmul.f32 %v1285, %v1289
        %1293 = vrot.lane.b32.xlu0 %v1286, 64
        %v1294 = vpop.permute.xlu0 %1293
        %v1296 = vmul.f32 %v1285, %v1294
        %1298 = vrot.lane.b32.xlu0 %v1296, 32
        %v1299 = vpop.permute.xlu0 %1298
        %v1301 = vadd.f32 %v1291, %v1299
        %v1302 = vtanh.pop %v1301
        %1304 = vrot.lane.b32.xlu0 %v1302, 64
        %v1305 = vpop.permute.xlu0 %1304
        %v1307 = vmul.f32 %v1285, %v1305
        %v1308 = vld [vmem:[%s15] sm:$0xff]
        %v1309 = vld [vmem:[%s15 + $0x8] sm:$0xff]
        %v1310 = vld [vmem:[%s15 + $0x10] sm:$0xff]
        %v1311 = vld [vmem:[%s15 + $0x18] sm:$0xff]
        %v1312 = vld [vmem:[%s16] sm:$0x1]
        %v1314 = vperm.slane %v1312, 0
        %1317 = vrot.lane.b32.xlu0 %v1307, 32
        %v1318 = vpop.permute.xlu0 %1317
        %v1319 = vsel %vm580, %v1318, 0
        %1321 = vmatpush.msra.mxu0 0.0
        %1322 = vmatpush.msra.mxu0 0.0
        %1323 = vmatpush.msra.mxu0 0.0
        %1324 = vmatpush.msra.mxu0 0.0
        %1325 = vmatpush.msra.mxu0 0.0
        %1326 = vmatpush.msra.mxu0 0.0
        %1327 = vmatpush.msra.mxu0 0.0
        %1328 = vmatpush.msra.mxu0 0.0
        %1329 = vmatpush.msra.mxu0 0.0
        %1330 = vmatpush.msra.mxu0 0.0
        %1331 = vmatpush.msra.mxu0 0.0
        %1332 = vmatpush.msra.mxu0 0.0
        %1333 = vmatpush.msra.mxu0 %v1311
        %1334 = vmatpush.msra.mxu0 %v1310
        %1335 = vmatpush.msra.mxu0 %v1309
        %1336 = vmatpush.msra.mxu0 %v1308
        %1337 = vmatmul.f32.gmra.mxu0 %v1319
        %v1338 = vpop.f32.mrf.mxu0
        %v1339 = vadd.f32 %v1314, %v1338
        %1340 = vdwg.mxu0
        %1341 = vmax.xlane.f32.xlu0 %v1339
        %v1342 = vpop.xlane.xlu0 %1341
        %v1343 = vsub.f32 %v1339, %v1342
        %v1344 = vmul.f32 %v1343, 1.442695
        %v1345 = vpow.pop %v1344
        %1346 = vadd.xlane.f32.xlu0 %v1345
        %v1347 = vpop.xlane.xlu0 %1346
        %v1348 = vlog2.pop %v1347
        %v1349 = vmul.f32 %v1348, 0.6931472
        %v1350 = vsub.f32 %v1343, %v1349
        %1351 = vst [vmem:[%s525] sm:$0xff] %v1350
        %1353 = vst.msk [vmem:[#allocation2] sm:$0xff] %vm580, %v685
        %1355 = vrot.lane.b32.xlu0 %v668, 96
        %v1356 = vpop.permute.xlu0 %1355
        %1358 = vst.msk [vmem:[#allocation3] sm:$0xff] %vm580, %v1356
        %1360 = vst.msk [vmem:[#allocation4] sm:$0xff] %vm580, %v1318
        %1362 = vrot.lane.b32.xlu0 %v1301, 96
        %v1363 = vpop.permute.xlu0 %1362
        %1365 = vst.msk [vmem:[#allocation5] sm:$0xff] %vm580, %v1363
      $region96: #{_lsff_forward_impl.3} parent=83 // pred_fallthru
        _
      %p1366 = scmp.lt.s32.totalorder %s36, 6
      %s1367 = scalar_select %p1366, %s36, 6
      %s1368 = smul.addr %s1367, 8
      %s1369 = scalar_lea.vmem %s17, %s1368
      // Predicated region
      $region97: #{_lsff_forward_impl.3} parent=83 // pred_check
        %p1370 = pneg %p395
      $region98: #{_lsff_forward_impl.3} parent=83 // pred_check_branch
        %1372 = sbr.rel (%p1370) target = $region100
      $region99: #{_lsff_forward_impl.3} parent=83 // pred_region
        _
      $region100: #{_lsff_forward_impl.3} parent=83 // pred_fallthru
        _
    $region84: #{_lsff_forward_impl.3} parent=5 // pred_fallthru
      _
    %p1373 = scmp.le.s32.totalorder 2, %s31
    // Predicated region
    $region101: #{_lsff_forward_impl.3} parent=5 // pred_check
      %p1374 = pneg %p1373
    $region102: #{_lsff_forward_impl.3} parent=5 // pred_check_branch
      %1376 = sbr.rel (%p1374) target = $region104
    $region103: #{_lsff_forward_impl.3} parent=5 // pred_region
      %s1377 = ssub.s32 %s31, 2
      // Predicated region
      $region105: #{_lsff_forward_impl.3} parent=103 // pred_check
        %p1378 = pneg %p401
      $region106: #{_lsff_forward_impl.3} parent=103 // pred_check_branch
        %1380 = sbr.rel (%p1378) target = $region108
      $region107: #{_lsff_forward_impl.3} parent=103 // pred_region
        %p1381 = scmp.lt.s32.totalorder %s37, 6
        %s1382 = scalar_select %p1381, %s37, 6
        %s1383 = smul.addr %s1382, 8
        %s1384 = scalar_lea.vmem %s17, %s1383
      $region108: #{_lsff_forward_impl.3} parent=103 // pred_fallthru
        _
    $region104: #{_lsff_forward_impl.3} parent=5 // pred_fallthru
      _
  $region6: #{_lsff_forward_impl.3} parent=0 // loop_footer
    %s35 = sadd.s32 1, %s31
  $region7: #{_lsff_forward_impl.3} parent=0 // loop_footer_branch
    %30 = sbr.rel target = $region3
  $region8: #{_lsff_forward_impl.3} parent=0 // loop_exit
    _

</llo_original>
